<compile_context>
chip_gen: v7x
topology: tpu7x:2x2x1
jax: 0.10.0
libtpu: 0.0.40
codegen_flags: <defaults>
</compile_context>

<pallas_src>
import jax
import jax.numpy as jnp
from jax.experimental import pallas as pl
from jax.experimental.pallas import tpu as pltpu


def _pos_emb_kernel(x_ref, f_ref, o_ref):
    # x_ref: (1, tm) f32 (positions on lanes)
    # f_ref: (half, 1) f32 (factor-scaled freqs on sublanes)
    # o_ref: (num_channels, tm) f32 (cos rows then sin rows), lane-dense.
    phase = f_ref[...] * x_ref[...]                        # (half, tm)
    o_ref[...] = jnp.concatenate(
        [jnp.cos(phase), jnp.sin(phase)], axis=0)          # single dense store


def positional_embedding(
    x,
    *,
    num_channels: int,
    max_positions: int,
    factor: float,
    endpoint: bool = False,
    rearrange: bool = False,
    tm: int = 4096,
):
    """Pallas implementation of PositionalEmbedding.forward (returns (N, C))."""
    if num_channels % 2 != 0:
        raise ValueError("num_channels must be even")
    half = num_channels // 2
    denom = half - (1 if endpoint else 0)
    if denom <= 0:
        raise ValueError("endpoint=True requires num_channels >= 4")

    # freqs (tiny, computed once in plain JAX); fold `factor` in here.
    freqs = jnp.arange(half, dtype=jnp.float32) / jnp.float32(denom)
    freqs = (1.0 / max_positions) ** freqs
    freqs_scaled = (freqs * jnp.float32(factor)).reshape(half, 1)

    # Flatten input; positions go on the lane axis.
    x_flat = jnp.reshape(x, (-1,)).astype(jnp.float32)
    n = x_flat.shape[0]

    # Lane tile: multiple of 128, as large as possible for HBM-store roofline,
    # but capped so the grid keeps >= ~4 steps (megacore sharding + pipelining).
    tm_target = max(128, ((((n + 3) // 4) + 127) // 128) * 128)
    tm = min(tm, tm_target)
    n_pad = ((n + tm - 1) // tm) * tm
    x_padded = jnp.pad(x_flat, (0, n_pad - n)).reshape(1, n_pad)

    grid = (n_pad // tm,)

    out_cn = pl.pallas_call(
        _pos_emb_kernel,
        out_shape=jax.ShapeDtypeStruct((num_channels, n_pad), jnp.float32),
        grid_spec=pltpu.PrefetchScalarGridSpec(
            num_scalar_prefetch=0,
            grid=grid,
            in_specs=[
                pl.BlockSpec((1, tm), lambda i: (0, i)),        # x on lanes
                pl.BlockSpec((half, 1), lambda i: (0, 0)),      # freqs (resident)
            ],
            out_specs=pl.BlockSpec((num_channels, tm), lambda i: (0, i)),
        ),
        compiler_params=pltpu.CompilerParams(
            dimension_semantics=("parallel",),
        ),
    )(x_padded, freqs_scaled)

    out_cn = out_cn[:, :n]                                  # drop padded lanes

    if rearrange:
        # 'b (f c) -> b (c f)' with f=2: in channels-major layout this is just
        # a row permutation [cos0, sin0, cos1, sin1, ...]; it fuses with the
        # transpose below.
        perm = jnp.arange(num_channels).reshape(2, half).T.reshape(-1)
        out_cn = out_cn[perm, :]

    return out_cn.T                                         # (N, C) row-major


def _reference(x, *, num_channels, max_positions, factor, endpoint=False,
               rearrange=False):
    half = num_channels // 2
    x = jnp.reshape(x, (-1,)).astype(jnp.float32) * factor
    freqs = jnp.arange(half, dtype=jnp.float32) / (half - (1 if endpoint else 0))
    freqs = (1.0 / max_positions) ** freqs
    phase = jnp.outer(x, freqs)
    out = jnp.concatenate([jnp.cos(phase), jnp.sin(phase)], axis=1)
    if rearrange:
        n = out.shape[0]
        out = out.reshape(n, 2, half).transpose(0, 2, 1).reshape(n, num_channels)
    return out


if __name__ == "__main__":
    key = jax.random.PRNGKey(0)

    # --- Test 1: main config (same as the module defaults used previously) ---
    num_channels = 32
    max_positions = 10000
    factor = 1.0

    # Any input shape: flattened inside the forward. (2, 4, 16, 16) -> N=2048.
    x = jax.random.normal(key, (2, 4, 16, 16), dtype=jnp.float32) * 100.0

    out = positional_embedding(
        x, num_channels=num_channels, max_positions=max_positions,
        factor=factor, endpoint=False, rearrange=False)
    out = jax.block_until_ready(out)

    ref = _reference(
        x, num_channels=num_channels, max_positions=max_positions,
        factor=factor, endpoint=False, rearrange=False)

    assert out.shape == (2 * 4 * 16 * 16, num_channels), out.shape
    assert jnp.allclose(out, ref, atol=1e-5, rtol=1e-5), float(
        jnp.max(jnp.abs(out - ref)))

    # --- Test 2: factor folding, endpoint=True, rearrange=True, small C ---
    x2 = jax.random.normal(jax.random.PRNGKey(0), (2, 8, 8), dtype=jnp.float32) * 10.0
    out2 = positional_embedding(
        x2, num_channels=8, max_positions=1000, factor=3.0,
        endpoint=True, rearrange=True)
    out2 = jax.block_until_ready(out2)
    ref2 = _reference(
        x2, num_channels=8, max_positions=1000, factor=3.0,
        endpoint=True, rearrange=True)

    assert out2.shape == (2 * 8 * 8, 8), out2.shape
    assert jnp.allclose(out2, ref2, atol=1e-4, rtol=1e-4), float(
        jnp.max(jnp.abs(out2 - ref2)))

    print("KERNEL_OK")
</pallas_src>

<mosaic_0001>
module attributes {stable_mosaic.version = 11 : i64} {
  func.func @_pos_emb_kernel(%arg0: i32, %arg1: memref<1x512xf32, #tpu.memory_space<vmem>>, %arg2: memref<16x1xf32, #tpu.memory_space<vmem>>, %arg3: memref<32x512xf32, #tpu.memory_space<vmem>>) attributes {dimension_semantics = [#tpu.dimension_semantics<parallel>], iteration_bounds = array<i64: 4>, scalar_prefetch = 0 : i64, scratch_operands = 0 : i64, tpu.core_type = #tpu.core_type<tc>, window_params = [{transform_indices = @transform_0, window_bounds = array<i64: 1, 512>}, {pipeline_mode = #tpu.pipeline_mode<synchronous>, transform_indices = @transform_1, window_bounds = array<i64: 16, 1>}, {transform_indices = @transform_2, window_bounds = array<i64: 32, 512>}]} {
    %c0 = arith.constant 0 : index
    %c0_0 = arith.constant 0 : index
    %0 = vector.load %arg2[%c0, %c0_0] : memref<16x1xf32, #tpu.memory_space<vmem>>, vector<16x1xf32>
    %c0_1 = arith.constant 0 : index
    %c0_2 = arith.constant 0 : index
    %1 = vector.load %arg1[%c0_1, %c0_2] : memref<1x512xf32, #tpu.memory_space<vmem>>, vector<1x512xf32>
    %2 = vector.broadcast %0 : vector<16x1xf32> to vector<16x512xf32>
    %3 = vector.broadcast %1 : vector<1x512xf32> to vector<16x512xf32>
    %4 = arith.mulf %2, %3 : vector<16x512xf32>
    %5 = math.cos %4 : vector<16x512xf32>
    %6 = math.sin %4 : vector<16x512xf32>
    %7 = tpu.concatenate %5, %6 in 0 : vector<16x512xf32>, vector<16x512xf32> -> vector<32x512xf32>
    %c0_3 = arith.constant 0 : index
    %c0_4 = arith.constant 0 : index
    %8 = vector.load %arg3[%c0_3, %c0_4] : memref<32x512xf32, #tpu.memory_space<vmem>>, vector<32x512xf32>
    tpu.vector_store %arg3[%c0_3, %c0_4], %7 {strides = array<i32>} : memref<32x512xf32, #tpu.memory_space<vmem>>, vector<32x512xf32>,
    return
  }
  func.func @transform_0(%arg0: i32) -> (i32, i32) {
    %c0_i32 = arith.constant 0 : i32
    %c0_i32_0 = arith.constant 0 : i32
    return %c0_i32, %arg0 : i32, i32
  }
  func.func @transform_1(%arg0: i32) -> (i32, i32) {
    %c0_i32 = arith.constant 0 : i32
    %c0_i32_0 = arith.constant 0 : i32
    %c0_i32_1 = arith.constant 0 : i32
    return %c0_i32, %c0_i32_0 : i32, i32
  }
  func.func @transform_2(%arg0: i32) -> (i32, i32) {
    %c0_i32 = arith.constant 0 : i32
    %c0_i32_0 = arith.constant 0 : i32
    return %c0_i32, %arg0 : i32, i32
  }
}

</mosaic_0001>

<llo_original>
// kernel: tpu_custom_call.1
$region0: #{tpu_custom_call.1}
  #allocation0 [shape = 'u32[]', space=smem, size = 0x4, offset = 0x4, fixed_abs, tag = 'smem constant byte address 0x4 - core index']
  #allocation1 [shape = 'u32[144,128]{1,0:T(1,128)}', space=vmem, size = 0x12000, scoped, tag = 'internal scratch']
  %s0 = inlined_call_operand.vmem [shape: f32[1,2048], index: 0, kind: input, shape index: {}]
  %s1 = inlined_call_operand.vmem [shape: f32[16,1], index: 1, kind: input, shape index: {}]
  %s2 = inlined_call_operand.hbm [shape: f32[32,2048], index: 2, kind: output, shape index: {}]
  %s3 = sld [smem:[#allocation0]]
  $region41: #{tpu_custom_call.1} parent=0
    _
  %s5 = ssub.s32 1, %s3
  %s6 = scalar_select 0, %s5, %s3
  $region1: #{tpu_custom_call.1} parent=0
    #allocation2 [shape = 'u8[131072]{0}', space=vmem, size = 0x20000, scoped, tag = 'output window, operand 0']
    #allocation3 [shape = 's32[2]{0}', space=sflag, size = 0x8, scoped, tag = 'scoped memory for tpu_custom_call.1']
    %7 = vsyncpa [#allocation3], 0
    %s8 = scalar_lea.sflag [#allocation3], 1
    %9 = vsyncpa %s8, 0
    loop: start=0, step=1, limit=6
    $region2: #{tpu_custom_call.1} parent=1 // loop_pre_header
      _
    $region3: #{tpu_custom_call.1} parent=1 // loop_header
      %s11 = sphi 0, %s15
      %p12 = scmp.ge.s32.totalorder %s11, 6
      %s21 = sphi 0, %s23
      %s24 = sphi 0, %s21
      %s25 = sphi 0, %s24
      %s41 = sphi 0, %s25
      %s45 = sphi 0, %s45
      %s47 = sphi 0, %s45
      %s48 = sphi 0, %s47
      %s62 = sphi 0, %s48
      %s68 = sphi 0, %s70
      %s71 = sphi 0, %s68
      %s72 = sphi 0, %s71
      %s88 = sphi 0, %s72
    $region4: #{tpu_custom_call.1} parent=1 // loop_header_branch
      %14 = sbr.rel (%p12) target = $region8
    $region5: #{tpu_custom_call.1} parent=1 // loop_body
      %s16 = ssub.s32 %s11, 1
      %s17 = ssub.s32 %s11, 2
      %s18 = sadd.s32 %s11, 1
      %s19 = ssub.s32 %s11, %s18
      %p20 = scmp.eq.s32.totalorder %s19, 0
      %s22 = sadd.s32 %s21, 1
      %s23 = scalar_select %p20, %s21, %s22
      %p26 = pneg %p20
      %p27 = scmp.eq.s32.totalorder %s11, 3
      %p28 = por %p26, %p27
      %p29 = scmp.ne.s32.totalorder %s21, %s24
      %p30 = scmp.eq.s32.totalorder %s11, 0
      %p31 = por %p29, %p30
      %p32 = scmp.ne.s32.totalorder %s21, %s24
      %p33 = scmp.eq.s32.totalorder %s16, 3
      %p34 = por %p32, %p33
      %p35 = scmp.ne.s32.totalorder %s24, %s25
      %p36 = scmp.eq.s32.totalorder %s16, 0
      %p37 = por %p35, %p36
      %p38 = scmp.ne.s32.totalorder %s24, %s25
      %p39 = scmp.eq.s32.totalorder %s17, 3
      %p40 = por %p38, %p39
      %p42 = scmp.ne.s32.totalorder %s25, %s41
      %p43 = scmp.eq.s32.totalorder %s17, 0
      %p44 = por %p42, %p43
      %s46 = sadd.s32 %s45, 1
      %p49 = scmp.eq.s32.totalorder %s11, 3
      %p50 = scmp.ne.s32.totalorder %s45, %s47
      %p51 = scmp.eq.s32.totalorder %s11, 0
      %p52 = por %p50, %p51
      %p53 = scmp.ne.s32.totalorder %s45, %s47
      %p54 = scmp.eq.s32.totalorder %s16, 3
      %p55 = por %p53, %p54
      %p56 = scmp.ne.s32.totalorder %s47, %s48
      %p57 = scmp.eq.s32.totalorder %s16, 0
      %p58 = por %p56, %p57
      %p59 = scmp.ne.s32.totalorder %s47, %s48
      %p60 = scmp.eq.s32.totalorder %s17, 3
      %p61 = por %p59, %p60
      %p63 = scmp.ne.s32.totalorder %s48, %s62
      %p64 = scmp.eq.s32.totalorder %s17, 0
      %p65 = por %p63, %p64
      %s66 = ssub.s32 %s11, %s18
      %p67 = scmp.eq.s32.totalorder %s66, 0
      %s69 = sadd.s32 %s68, 1
      %s70 = scalar_select %p67, %s68, %s69
      %p73 = pneg %p67
      %p74 = scmp.eq.s32.totalorder %s11, 3
      %p75 = por %p73, %p74
      %p76 = scmp.ne.s32.totalorder %s68, %s71
      %p77 = scmp.eq.s32.totalorder %s11, 0
      %p78 = por %p76, %p77
      %p79 = scmp.ne.s32.totalorder %s68, %s71
      %p80 = scmp.eq.s32.totalorder %s16, 3
      %p81 = por %p79, %p80
      %p82 = scmp.ne.s32.totalorder %s71, %s72
      %p83 = scmp.eq.s32.totalorder %s16, 0
      %p84 = por %p82, %p83
      %p85 = scmp.ne.s32.totalorder %s71, %s72
      %p86 = scmp.eq.s32.totalorder %s17, 3
      %p87 = por %p85, %p86
      %p89 = scmp.ne.s32.totalorder %s72, %s88
      %p90 = scmp.eq.s32.totalorder %s17, 0
      %p91 = por %p89, %p90
      %p92 = scmp.le.s32.totalorder 1, %s11
      %p93 = scmp.lt.s32.totalorder %s11, 5
      %p94 = pnand %p92, %p93
      %p95 = pneg %p94
      // Predicated region
      $region9: #{tpu_custom_call.1} parent=5 // pred_check
        _
      $region10: #{tpu_custom_call.1} parent=5 // pred_check_branch
        %97 = sbr.rel (%p94) target = $region12
      $region11: #{tpu_custom_call.1} parent=5 // pred_region
        %s98 = ssub.s32 %s11, 1
        // Predicated region
        $region13: #{tpu_custom_call.1} parent=11 // pred_check
          %p99 = pneg %p58
        $region14: #{tpu_custom_call.1} parent=11 // pred_check_branch
          %101 = sbr.rel (%p99) target = $region16
        $region15: #{tpu_custom_call.1} parent=11 // pred_region
          _
        $region16: #{tpu_custom_call.1} parent=11 // pred_fallthru
          _
      $region12: #{tpu_custom_call.1} parent=5 // pred_fallthru
        _
      %p102 = scmp.lt.s32.totalorder %s11, 4
      // Predicated region
      $region17: #{tpu_custom_call.1} parent=5 // pred_check
        %p103 = pneg %p102
      $region18: #{tpu_custom_call.1} parent=5 // pred_check_branch
        %105 = sbr.rel (%p103) target = $region20
      $region19: #{tpu_custom_call.1} parent=5 // pred_region
        // Predicated region
        $region21: #{tpu_custom_call.1} parent=19 // pred_check
          %p106 = pneg %p31
        $region22: #{tpu_custom_call.1} parent=19 // pred_check_branch
          %108 = sbr.rel (%p106) target = $region24
        $region23: #{tpu_custom_call.1} parent=19 // pred_region
          %s109 = smul.u32 4, %s11
          %p110 = scmp.lt.s32.totalorder %s109, 15
          %s111 = scalar_select %p110, %s109, 15
          %s112 = scalar_lea.vmem %s0, %s111
          %s113 = smul.u32 4, %s11
        $region24: #{tpu_custom_call.1} parent=19 // pred_fallthru
          _
      $region20: #{tpu_custom_call.1} parent=5 // pred_fallthru
        _
      %p114 = scmp.le.s32.totalorder 1, %s11
      %p115 = scmp.lt.s32.totalorder %s11, 5
      %p116 = pnand %p114, %p115
      %p117 = pneg %p116
      // Predicated region
      $region25: #{tpu_custom_call.1} parent=5 // pred_check
        _
      $region26: #{tpu_custom_call.1} parent=5 // pred_check_branch
        %119 = sbr.rel (%p116) target = $region28
      $region27: #{tpu_custom_call.1} parent=5 // pred_region
        %s120 = ssub.s32 %s11, 1
        %s121 = smul.u32 4, %s16
        %p122 = scmp.lt.s32.totalorder %s121, 15
        %s123 = scalar_select %p122, %s121, 15
        %s124 = scalar_lea.vmem %s0, %s123
        %p125 = pneg %p37
        %p126 = pneg %p34
        %p127 = pneg %p58
        %p128 = pneg %p55
        %p129 = pneg %p84
        %p130 = pneg %p81
        %s131 = sand.u32 %s71, 1
        %s132 = scalar_lea.sflag [#allocation3], %s131
        %s133 = sand.u32 %s71, 1
        %s134 = smul.addr %s133, 128
        %s135 = scalar_lea.vmem [#allocation2], %s134
        %s136 = smul.u32 4, %s16
        %p137 = scmp.lt.s32.totalorder %s136, 15
        %s138 = scalar_select %p137, %s136, 15
        %s139 = scalar_lea.vmem %s0, %s138
        %s140 = smul.u32 4, %s16
        %s141 = smul.u32 4, %s16
        %v142 = vld [vmem:[%s1] sm:$0xff]
        %v143 = vld [vmem:[%s1 + $0x8] sm:$0xff]
        %v144 = vld [vmem:[%s139] sm:$0xf]
        %146 = vset.pattern.permute.xlu0 0
        %147 = vperm.xlu0 %146, %v142
        %v148 = vpop.permute.xlu0 %147
        %151 = vset.pattern.permute.xlu0 0
        %152 = vperm.xlu0 %151, %v143
        %v153 = vpop.permute.xlu0 %152
        %v156 = vlaneseq
        %v157 = vshrl.u32 %v156, 7
        %v158 = vsub.s32 0, %v157
        %v159 = vrot.slane %v144, %v158
        %v160 = vlaneseq
        %v161 = vshrl.u32 %v160, 7
        %v162 = vsub.s32 1, %v161
        %v163 = vrot.slane %v144, %v162
        %v164 = vlaneseq
        %v165 = vshrl.u32 %v164, 7
        %v166 = vsub.s32 2, %v165
        %v167 = vrot.slane %v144, %v166
        %v168 = vlaneseq
        %v169 = vshrl.u32 %v168, 7
        %v170 = vsub.s32 3, %v169
        %v171 = vrot.slane %v144, %v170
        %v176 = vmul.f32 %v148, %v159
        %v177 = vmul.f32 %v148, %v163
        %v178 = vmul.f32 %v148, %v167
        %v179 = vmul.f32 %v148, %v171
        %v180 = vmul.f32 %v153, %v159
        %v181 = vmul.f32 %v153, %v163
        %v182 = vmul.f32 %v153, %v167
        %v183 = vmul.f32 %v153, %v171
        %v184 = vand.u32 2147483647, %v176
        %vm185 = vcmp.le.f32.partialorder %v184, 0.7853982
        %vm186 = vcmp.lt.s32.totalorder %v176, 0
        %v187 = vand.u32 %v176, 2139095040
        %v188 = vshrl.u32 %v187, 23
        %v189 = vsub.s32 %v188, 127
        %v190 = vand.u32 2147483647, %v176
        %v191 = vand.u32 %v190, 8388607
        %v192 = vor.u32 %v191, 8388608
        %v193 = vsub.s32 0, %v192
        %v194 = vadd.s32 %v189, 1
        %vm195 = vcmp.gt.s32.totalorder %v194, 0
        %v196 = vsel %vm195, %v194, 0
        %v197 = vshrl.u32 %v196, 5
        %v198 = vand.u32 %v196, 31
        %v199 = vsub.s32 32, %v198
        %v200 = vshrl.u32 683565275, %v199
        %v201 = vshll.u32 683565275, %v198
        %v202 = vshrl.u32 2475754826, %v199
        %v203 = vor.u32 %v201, %v202
        %v204 = vshll.u32 2475754826, %v198
        %v205 = vshrl.u32 2131351028, %v199
        %v206 = vor.u32 %v204, %v205
        %v207 = vshll.u32 2131351028, %v198
        %v208 = vshrl.u32 2102212464, %v199
        %v209 = vor.u32 %v207, %v208
        %v210 = vshll.u32 2102212464, %v198
        %v211 = vshrl.u32 920167782, %v199
        %v212 = vor.u32 %v210, %v211
        %v213 = vshll.u32 920167782, %v198
        %v214 = vshrl.u32 1326507024, %v199
        %v215 = vor.u32 %v213, %v214
        %vm216 = vcmp.lt.s32.totalorder %v197, 1
        %vm217 = vcmp.lt.s32.totalorder %v197, 2
        %vm218 = vcmp.lt.s32.totalorder %v197, 3
        %vm219 = vcmp.lt.s32.totalorder %v197, 4
        %v220 = vsel %vm216, %v200, %v203
        %v221 = vsel %vm219, %v209, 2102212464
        %v222 = vsel %vm218, %v206, %v221
        %v223 = vsel %vm217, %v220, %v222
        %v224 = vsel %vm216, %v203, %v206
        %v225 = vsel %vm219, %v212, 920167782
        %v226 = vsel %vm218, %v209, %v225
        %v227 = vsel %vm217, %v224, %v226
        %v228 = vsel %vm216, %v206, %v209
        %v229 = vsel %vm219, %v215, 1326507024
        %v230 = vsel %vm218, %v212, %v229
        %v231 = vsel %vm217, %v228, %v230
        %v232 = vshll.u32 %v192, 8
        %v233 = vmul.u32.u64.compose %v232, %v231
        %v234 = vextract.low.u32 %v233
        %v235 = vextract.high.u32 %v233
        %v236 = vmul.u32.u64.compose %v232, %v227
        %v237 = vextract.low.u32 %v236
        %v238 = vextract.high.u32 %v236
        %v239 = vmul.u32 %v232, %v223
        %v240 = vadd.s32 %v235, %v237
        %vm241 = vc.u32 %v235, %v237
        %v242 = vadd.s32 %v238, 1
        %v243 = vsel %vm241, %v242, %v238
        %v244 = vadd.s32 %v239, %v243
        %v245 = vadd.s32 %v244, 536870912
        %v246 = vshrl.u32 %v245, 30
        %v247 = vshll.u32 %v246, 30
        %v248 = vsub.s32 %v244, %v247
        %vm249 = vcmp.lt.s32.totalorder %v248, 0
        %v250 = vsub.s32 0, %v248
        %v251 = vsel %vm249, %v250, %v248
        %v252 = vclz %v251
        %v253 = vsub.s32 %v252, 2
        %vm254 = vcmp.gt.s32.totalorder 0, %v253
        %v255 = vsel %vm254, 0, %v253
        %v256 = vsub.s32 32, %v255
        %v257 = vshll.u32 %v248, %v255
        %v258 = vshrl.u32 %v240, %v256
        %v259 = vor.u32 %v257, %v258
        %v260 = vsub.s32 4294967266, %v255
        %v261 = vadd.s32 %v260, 127
        %v262 = vshll.u32 %v261, 23
        %v263 = vor.u32 4788187, %v262
        %v264 = vand.u32 2147483647, %v263
        %v266 = vcvt.s32.f32 %v259
        %v267 = vmul.f32 %v266, %v264
        %v268 = vxor.u32 %v267, 2147483648
        %v269 = vsel %vm186, %v268, %v267
        %v270 = vsub.s32 4, %v246
        %v271 = vsel %vm186, %v270, %v246
        %v272 = vsel %vm185, %v176, %v269
        %v273 = vsel %vm185, 0, %v271
        %v274 = vcosq.f32.pop %v272
        %v275 = vsinq.f32.pop %v272
        %vm276 = vweird.f32 %v176
        %v277 = vand.u32 %v273, 3
        %vm278 = vcmp.lt.s32.totalorder %v277, 2
        %vm279 = vcmp.eq.s32.totalorder %v277, 0
        %v280 = vxor.u32 %v275, 2147483648
        %v281 = vsel %vm279, %v274, %v280
        %vm282 = vcmp.eq.s32.totalorder %v277, 2
        %v283 = vxor.u32 %v274, 2147483648
        %v284 = vsel %vm282, %v283, %v275
        %v285 = vsel %vm278, %v281, %v284
        %v286 = vsel %vm276, nan, %v285
        %v287 = vand.u32 2147483647, %v177
        %vm288 = vcmp.le.f32.partialorder %v287, 0.7853982
        %vm289 = vcmp.lt.s32.totalorder %v177, 0
        %v290 = vand.u32 %v177, 2139095040
        %v291 = vshrl.u32 %v290, 23
        %v292 = vsub.s32 %v291, 127
        %v293 = vand.u32 2147483647, %v177
        %v294 = vand.u32 %v293, 8388607
        %v295 = vor.u32 %v294, 8388608
        %v296 = vsub.s32 0, %v295
        %v297 = vadd.s32 %v292, 1
        %vm298 = vcmp.gt.s32.totalorder %v297, 0
        %v299 = vsel %vm298, %v297, 0
        %v300 = vshrl.u32 %v299, 5
        %v301 = vand.u32 %v299, 31
        %v302 = vsub.s32 32, %v301
        %v303 = vshrl.u32 683565275, %v302
        %v304 = vshll.u32 683565275, %v301
        %v305 = vshrl.u32 2475754826, %v302
        %v306 = vor.u32 %v304, %v305
        %v307 = vshll.u32 2475754826, %v301
        %v308 = vshrl.u32 2131351028, %v302
        %v309 = vor.u32 %v307, %v308
        %v310 = vshll.u32 2131351028, %v301
        %v311 = vshrl.u32 2102212464, %v302
        %v312 = vor.u32 %v310, %v311
        %v313 = vshll.u32 2102212464, %v301
        %v314 = vshrl.u32 920167782, %v302
        %v315 = vor.u32 %v313, %v314
        %v316 = vshll.u32 920167782, %v301
        %v317 = vshrl.u32 1326507024, %v302
        %v318 = vor.u32 %v316, %v317
        %vm319 = vcmp.lt.s32.totalorder %v300, 1
        %vm320 = vcmp.lt.s32.totalorder %v300, 2
        %vm321 = vcmp.lt.s32.totalorder %v300, 3
        %vm322 = vcmp.lt.s32.totalorder %v300, 4
        %v323 = vsel %vm319, %v303, %v306
        %v324 = vsel %vm322, %v312, 2102212464
        %v325 = vsel %vm321, %v309, %v324
        %v326 = vsel %vm320, %v323, %v325
        %v327 = vsel %vm319, %v306, %v309
        %v328 = vsel %vm322, %v315, 920167782
        %v329 = vsel %vm321, %v312, %v328
        %v330 = vsel %vm320, %v327, %v329
        %v331 = vsel %vm319, %v309, %v312
        %v332 = vsel %vm322, %v318, 1326507024
        %v333 = vsel %vm321, %v315, %v332
        %v334 = vsel %vm320, %v331, %v333
        %v335 = vshll.u32 %v295, 8
        %v336 = vmul.u32.u64.compose %v335, %v334
        %v337 = vextract.low.u32 %v336
        %v338 = vextract.high.u32 %v336
        %v339 = vmul.u32.u64.compose %v335, %v330
        %v340 = vextract.low.u32 %v339
        %v341 = vextract.high.u32 %v339
        %v342 = vmul.u32 %v335, %v326
        %v343 = vadd.s32 %v338, %v340
        %vm344 = vc.u32 %v338, %v340
        %v345 = vadd.s32 %v341, 1
        %v346 = vsel %vm344, %v345, %v341
        %v347 = vadd.s32 %v342, %v346
        %v348 = vadd.s32 %v347, 536870912
        %v349 = vshrl.u32 %v348, 30
        %v350 = vshll.u32 %v349, 30
        %v351 = vsub.s32 %v347, %v350
        %vm352 = vcmp.lt.s32.totalorder %v351, 0
        %v353 = vsub.s32 0, %v351
        %v354 = vsel %vm352, %v353, %v351
        %v355 = vclz %v354
        %v356 = vsub.s32 %v355, 2
        %vm357 = vcmp.gt.s32.totalorder 0, %v356
        %v358 = vsel %vm357, 0, %v356
        %v359 = vsub.s32 32, %v358
        %v360 = vshll.u32 %v351, %v358
        %v361 = vshrl.u32 %v343, %v359
        %v362 = vor.u32 %v360, %v361
        %v363 = vsub.s32 4294967266, %v358
        %v364 = vadd.s32 %v363, 127
        %v365 = vshll.u32 %v364, 23
        %v366 = vor.u32 4788187, %v365
        %v367 = vand.u32 2147483647, %v366
        %v369 = vcvt.s32.f32 %v362
        %v370 = vmul.f32 %v369, %v367
        %v371 = vxor.u32 %v370, 2147483648
        %v372 = vsel %vm289, %v371, %v370
        %v373 = vsub.s32 4, %v349
        %v374 = vsel %vm289, %v373, %v349
        %v375 = vsel %vm288, %v177, %v372
        %v376 = vsel %vm288, 0, %v374
        %v377 = vcosq.f32.pop %v375
        %v378 = vsinq.f32.pop %v375
        %vm379 = vweird.f32 %v177
        %v380 = vand.u32 %v376, 3
        %vm381 = vcmp.lt.s32.totalorder %v380, 2
        %vm382 = vcmp.eq.s32.totalorder %v380, 0
        %v383 = vxor.u32 %v378, 2147483648
        %v384 = vsel %vm382, %v377, %v383
        %vm385 = vcmp.eq.s32.totalorder %v380, 2
        %v386 = vxor.u32 %v377, 2147483648
        %v387 = vsel %vm385, %v386, %v378
        %v388 = vsel %vm381, %v384, %v387
        %v389 = vsel %vm379, nan, %v388
        %v390 = vand.u32 2147483647, %v178
        %vm391 = vcmp.le.f32.partialorder %v390, 0.7853982
        %vm392 = vcmp.lt.s32.totalorder %v178, 0
        %v393 = vand.u32 %v178, 2139095040
        %v394 = vshrl.u32 %v393, 23
        %v395 = vsub.s32 %v394, 127
        %v396 = vand.u32 2147483647, %v178
        %v397 = vand.u32 %v396, 8388607
        %v398 = vor.u32 %v397, 8388608
        %v399 = vsub.s32 0, %v398
        %v400 = vadd.s32 %v395, 1
        %vm401 = vcmp.gt.s32.totalorder %v400, 0
        %v402 = vsel %vm401, %v400, 0
        %v403 = vshrl.u32 %v402, 5
        %v404 = vand.u32 %v402, 31
        %v405 = vsub.s32 32, %v404
        %v406 = vshrl.u32 683565275, %v405
        %v407 = vshll.u32 683565275, %v404
        %v408 = vshrl.u32 2475754826, %v405
        %v409 = vor.u32 %v407, %v408
        %v410 = vshll.u32 2475754826, %v404
        %v411 = vshrl.u32 2131351028, %v405
        %v412 = vor.u32 %v410, %v411
        %v413 = vshll.u32 2131351028, %v404
        %v414 = vshrl.u32 2102212464, %v405
        %v415 = vor.u32 %v413, %v414
        %v416 = vshll.u32 2102212464, %v404
        %v417 = vshrl.u32 920167782, %v405
        %v418 = vor.u32 %v416, %v417
        %v419 = vshll.u32 920167782, %v404
        %v420 = vshrl.u32 1326507024, %v405
        %v421 = vor.u32 %v419, %v420
        %vm422 = vcmp.lt.s32.totalorder %v403, 1
        %vm423 = vcmp.lt.s32.totalorder %v403, 2
        %vm424 = vcmp.lt.s32.totalorder %v403, 3
        %vm425 = vcmp.lt.s32.totalorder %v403, 4
        %v426 = vsel %vm422, %v406, %v409
        %v427 = vsel %vm425, %v415, 2102212464
        %v428 = vsel %vm424, %v412, %v427
        %v429 = vsel %vm423, %v426, %v428
        %v430 = vsel %vm422, %v409, %v412
        %v431 = vsel %vm425, %v418, 920167782
        %v432 = vsel %vm424, %v415, %v431
        %v433 = vsel %vm423, %v430, %v432
        %v434 = vsel %vm422, %v412, %v415
        %v435 = vsel %vm425, %v421, 1326507024
        %v436 = vsel %vm424, %v418, %v435
        %v437 = vsel %vm423, %v434, %v436
        %v438 = vshll.u32 %v398, 8
        %v439 = vmul.u32.u64.compose %v438, %v437
        %v440 = vextract.low.u32 %v439
        %v441 = vextract.high.u32 %v439
        %v442 = vmul.u32.u64.compose %v438, %v433
        %v443 = vextract.low.u32 %v442
        %v444 = vextract.high.u32 %v442
        %v445 = vmul.u32 %v438, %v429
        %v446 = vadd.s32 %v441, %v443
        %vm447 = vc.u32 %v441, %v443
        %v448 = vadd.s32 %v444, 1
        %v449 = vsel %vm447, %v448, %v444
        %v450 = vadd.s32 %v445, %v449
        %v451 = vadd.s32 %v450, 536870912
        %v452 = vshrl.u32 %v451, 30
        %v453 = vshll.u32 %v452, 30
        %v454 = vsub.s32 %v450, %v453
        %vm455 = vcmp.lt.s32.totalorder %v454, 0
        %v456 = vsub.s32 0, %v454
        %v457 = vsel %vm455, %v456, %v454
        %v458 = vclz %v457
        %v459 = vsub.s32 %v458, 2
        %vm460 = vcmp.gt.s32.totalorder 0, %v459
        %v461 = vsel %vm460, 0, %v459
        %v462 = vsub.s32 32, %v461
        %v463 = vshll.u32 %v454, %v461
        %v464 = vshrl.u32 %v446, %v462
        %v465 = vor.u32 %v463, %v464
        %v466 = vsub.s32 4294967266, %v461
        %v467 = vadd.s32 %v466, 127
        %v468 = vshll.u32 %v467, 23
        %v469 = vor.u32 4788187, %v468
        %v470 = vand.u32 2147483647, %v469
        %v472 = vcvt.s32.f32 %v465
        %v473 = vmul.f32 %v472, %v470
        %v474 = vxor.u32 %v473, 2147483648
        %v475 = vsel %vm392, %v474, %v473
        %v476 = vsub.s32 4, %v452
        %v477 = vsel %vm392, %v476, %v452
        %v478 = vsel %vm391, %v178, %v475
        %v479 = vsel %vm391, 0, %v477
        %v480 = vcosq.f32.pop %v478
        %v481 = vsinq.f32.pop %v478
        %vm482 = vweird.f32 %v178
        %v483 = vand.u32 %v479, 3
        %vm484 = vcmp.lt.s32.totalorder %v483, 2
        %vm485 = vcmp.eq.s32.totalorder %v483, 0
        %v486 = vxor.u32 %v481, 2147483648
        %v487 = vsel %vm485, %v480, %v486
        %vm488 = vcmp.eq.s32.totalorder %v483, 2
        %v489 = vxor.u32 %v480, 2147483648
        %v490 = vsel %vm488, %v489, %v481
        %v491 = vsel %vm484, %v487, %v490
        %v492 = vsel %vm482, nan, %v491
        %v493 = vand.u32 2147483647, %v179
        %vm494 = vcmp.le.f32.partialorder %v493, 0.7853982
        %vm495 = vcmp.lt.s32.totalorder %v179, 0
        %v496 = vand.u32 %v179, 2139095040
        %v497 = vshrl.u32 %v496, 23
        %v498 = vsub.s32 %v497, 127
        %v499 = vand.u32 2147483647, %v179
        %v500 = vand.u32 %v499, 8388607
        %v501 = vor.u32 %v500, 8388608
        %v502 = vsub.s32 0, %v501
        %v503 = vadd.s32 %v498, 1
        %vm504 = vcmp.gt.s32.totalorder %v503, 0
        %v505 = vsel %vm504, %v503, 0
        %v506 = vshrl.u32 %v505, 5
        %v507 = vand.u32 %v505, 31
        %v508 = vsub.s32 32, %v507
        %v509 = vshrl.u32 683565275, %v508
        %v510 = vshll.u32 683565275, %v507
        %v511 = vshrl.u32 2475754826, %v508
        %v512 = vor.u32 %v510, %v511
        %v513 = vshll.u32 2475754826, %v507
        %v514 = vshrl.u32 2131351028, %v508
        %v515 = vor.u32 %v513, %v514
        %v516 = vshll.u32 2131351028, %v507
        %v517 = vshrl.u32 2102212464, %v508
        %v518 = vor.u32 %v516, %v517
        %v519 = vshll.u32 2102212464, %v507
        %v520 = vshrl.u32 920167782, %v508
        %v521 = vor.u32 %v519, %v520
        %v522 = vshll.u32 920167782, %v507
        %v523 = vshrl.u32 1326507024, %v508
        %v524 = vor.u32 %v522, %v523
        %vm525 = vcmp.lt.s32.totalorder %v506, 1
        %vm526 = vcmp.lt.s32.totalorder %v506, 2
        %vm527 = vcmp.lt.s32.totalorder %v506, 3
        %vm528 = vcmp.lt.s32.totalorder %v506, 4
        %v529 = vsel %vm525, %v509, %v512
        %v530 = vsel %vm528, %v518, 2102212464
        %v531 = vsel %vm527, %v515, %v530
        %v532 = vsel %vm526, %v529, %v531
        %v533 = vsel %vm525, %v512, %v515
        %v534 = vsel %vm528, %v521, 920167782
        %v535 = vsel %vm527, %v518, %v534
        %v536 = vsel %vm526, %v533, %v535
        %v537 = vsel %vm525, %v515, %v518
        %v538 = vsel %vm528, %v524, 1326507024
        %v539 = vsel %vm527, %v521, %v538
        %v540 = vsel %vm526, %v537, %v539
        %v541 = vshll.u32 %v501, 8
        %v542 = vmul.u32.u64.compose %v541, %v540
        %v543 = vextract.low.u32 %v542
        %v544 = vextract.high.u32 %v542
        %v545 = vmul.u32.u64.compose %v541, %v536
        %v546 = vextract.low.u32 %v545
        %v547 = vextract.high.u32 %v545
        %v548 = vmul.u32 %v541, %v532
        %v549 = vadd.s32 %v544, %v546
        %vm550 = vc.u32 %v544, %v546
        %v551 = vadd.s32 %v547, 1
        %v552 = vsel %vm550, %v551, %v547
        %v553 = vadd.s32 %v548, %v552
        %v554 = vadd.s32 %v553, 536870912
        %v555 = vshrl.u32 %v554, 30
        %v556 = vshll.u32 %v555, 30
        %v557 = vsub.s32 %v553, %v556
        %vm558 = vcmp.lt.s32.totalorder %v557, 0
        %v559 = vsub.s32 0, %v557
        %v560 = vsel %vm558, %v559, %v557
        %v561 = vclz %v560
        %v562 = vsub.s32 %v561, 2
        %vm563 = vcmp.gt.s32.totalorder 0, %v562
        %v564 = vsel %vm563, 0, %v562
        %v565 = vsub.s32 32, %v564
        %v566 = vshll.u32 %v557, %v564
        %v567 = vshrl.u32 %v549, %v565
        %v568 = vor.u32 %v566, %v567
        %v569 = vsub.s32 4294967266, %v564
        %v570 = vadd.s32 %v569, 127
        %v571 = vshll.u32 %v570, 23
        %v572 = vor.u32 4788187, %v571
        %v573 = vand.u32 2147483647, %v572
        %v575 = vcvt.s32.f32 %v568
        %v576 = vmul.f32 %v575, %v573
        %v577 = vxor.u32 %v576, 2147483648
        %v578 = vsel %vm495, %v577, %v576
        %v579 = vsub.s32 4, %v555
        %v580 = vsel %vm495, %v579, %v555
        %v581 = vsel %vm494, %v179, %v578
        %v582 = vsel %vm494, 0, %v580
        %v583 = vcosq.f32.pop %v581
        %v584 = vsinq.f32.pop %v581
        %vm585 = vweird.f32 %v179
        %v586 = vand.u32 %v582, 3
        %vm587 = vcmp.lt.s32.totalorder %v586, 2
        %vm588 = vcmp.eq.s32.totalorder %v586, 0
        %v589 = vxor.u32 %v584, 2147483648
        %v590 = vsel %vm588, %v583, %v589
        %vm591 = vcmp.eq.s32.totalorder %v586, 2
        %v592 = vxor.u32 %v583, 2147483648
        %v593 = vsel %vm591, %v592, %v584
        %v594 = vsel %vm587, %v590, %v593
        %v595 = vsel %vm585, nan, %v594
        %v596 = vand.u32 2147483647, %v180
        %vm597 = vcmp.le.f32.partialorder %v596, 0.7853982
        %vm598 = vcmp.lt.s32.totalorder %v180, 0
        %v599 = vand.u32 %v180, 2139095040
        %v600 = vshrl.u32 %v599, 23
        %v601 = vsub.s32 %v600, 127
        %v602 = vand.u32 2147483647, %v180
        %v603 = vand.u32 %v602, 8388607
        %v604 = vor.u32 %v603, 8388608
        %v605 = vsub.s32 0, %v604
        %v606 = vadd.s32 %v601, 1
        %vm607 = vcmp.gt.s32.totalorder %v606, 0
        %v608 = vsel %vm607, %v606, 0
        %v609 = vshrl.u32 %v608, 5
        %v610 = vand.u32 %v608, 31
        %v611 = vsub.s32 32, %v610
        %v612 = vshrl.u32 683565275, %v611
        %v613 = vshll.u32 683565275, %v610
        %v614 = vshrl.u32 2475754826, %v611
        %v615 = vor.u32 %v613, %v614
        %v616 = vshll.u32 2475754826, %v610
        %v617 = vshrl.u32 2131351028, %v611
        %v618 = vor.u32 %v616, %v617
        %v619 = vshll.u32 2131351028, %v610
        %v620 = vshrl.u32 2102212464, %v611
        %v621 = vor.u32 %v619, %v620
        %v622 = vshll.u32 2102212464, %v610
        %v623 = vshrl.u32 920167782, %v611
        %v624 = vor.u32 %v622, %v623
        %v625 = vshll.u32 920167782, %v610
        %v626 = vshrl.u32 1326507024, %v611
        %v627 = vor.u32 %v625, %v626
        %vm628 = vcmp.lt.s32.totalorder %v609, 1
        %vm629 = vcmp.lt.s32.totalorder %v609, 2
        %vm630 = vcmp.lt.s32.totalorder %v609, 3
        %vm631 = vcmp.lt.s32.totalorder %v609, 4
        %v632 = vsel %vm628, %v612, %v615
        %v633 = vsel %vm631, %v621, 2102212464
        %v634 = vsel %vm630, %v618, %v633
        %v635 = vsel %vm629, %v632, %v634
        %v636 = vsel %vm628, %v615, %v618
        %v637 = vsel %vm631, %v624, 920167782
        %v638 = vsel %vm630, %v621, %v637
        %v639 = vsel %vm629, %v636, %v638
        %v640 = vsel %vm628, %v618, %v621
        %v641 = vsel %vm631, %v627, 1326507024
        %v642 = vsel %vm630, %v624, %v641
        %v643 = vsel %vm629, %v640, %v642
        %v644 = vshll.u32 %v604, 8
        %v645 = vmul.u32.u64.compose %v644, %v643
        %v646 = vextract.low.u32 %v645
        %v647 = vextract.high.u32 %v645
        %v648 = vmul.u32.u64.compose %v644, %v639
        %v649 = vextract.low.u32 %v648
        %v650 = vextract.high.u32 %v648
        %v651 = vmul.u32 %v644, %v635
        %v652 = vadd.s32 %v647, %v649
        %vm653 = vc.u32 %v647, %v649
        %v654 = vadd.s32 %v650, 1
        %v655 = vsel %vm653, %v654, %v650
        %v656 = vadd.s32 %v651, %v655
        %v657 = vadd.s32 %v656, 536870912
        %v658 = vshrl.u32 %v657, 30
        %v659 = vshll.u32 %v658, 30
        %v660 = vsub.s32 %v656, %v659
        %vm661 = vcmp.lt.s32.totalorder %v660, 0
        %v662 = vsub.s32 0, %v660
        %v663 = vsel %vm661, %v662, %v660
        %v664 = vclz %v663
        %v665 = vsub.s32 %v664, 2
        %vm666 = vcmp.gt.s32.totalorder 0, %v665
        %v667 = vsel %vm666, 0, %v665
        %v668 = vsub.s32 32, %v667
        %v669 = vshll.u32 %v660, %v667
        %v670 = vshrl.u32 %v652, %v668
        %v671 = vor.u32 %v669, %v670
        %v672 = vsub.s32 4294967266, %v667
        %v673 = vadd.s32 %v672, 127
        %v674 = vshll.u32 %v673, 23
        %v675 = vor.u32 4788187, %v674
        %v676 = vand.u32 2147483647, %v675
        %v678 = vcvt.s32.f32 %v671
        %v679 = vmul.f32 %v678, %v676
        %v680 = vxor.u32 %v679, 2147483648
        %v681 = vsel %vm598, %v680, %v679
        %v682 = vsub.s32 4, %v658
        %v683 = vsel %vm598, %v682, %v658
        %v684 = vsel %vm597, %v180, %v681
        %v685 = vsel %vm597, 0, %v683
        %v686 = vcosq.f32.pop %v684
        %v687 = vsinq.f32.pop %v684
        %vm688 = vweird.f32 %v180
        %v689 = vand.u32 %v685, 3
        %vm690 = vcmp.lt.s32.totalorder %v689, 2
        %vm691 = vcmp.eq.s32.totalorder %v689, 0
        %v692 = vxor.u32 %v687, 2147483648
        %v693 = vsel %vm691, %v686, %v692
        %vm694 = vcmp.eq.s32.totalorder %v689, 2
        %v695 = vxor.u32 %v686, 2147483648
        %v696 = vsel %vm694, %v695, %v687
        %v697 = vsel %vm690, %v693, %v696
        %v698 = vsel %vm688, nan, %v697
        %v699 = vand.u32 2147483647, %v181
        %vm700 = vcmp.le.f32.partialorder %v699, 0.7853982
        %vm701 = vcmp.lt.s32.totalorder %v181, 0
        %v702 = vand.u32 %v181, 2139095040
        %v703 = vshrl.u32 %v702, 23
        %v704 = vsub.s32 %v703, 127
        %v705 = vand.u32 2147483647, %v181
        %v706 = vand.u32 %v705, 8388607
        %v707 = vor.u32 %v706, 8388608
        %v708 = vsub.s32 0, %v707
        %v709 = vadd.s32 %v704, 1
        %vm710 = vcmp.gt.s32.totalorder %v709, 0
        %v711 = vsel %vm710, %v709, 0
        %v712 = vshrl.u32 %v711, 5
        %v713 = vand.u32 %v711, 31
        %v714 = vsub.s32 32, %v713
        %v715 = vshrl.u32 683565275, %v714
        %v716 = vshll.u32 683565275, %v713
        %v717 = vshrl.u32 2475754826, %v714
        %v718 = vor.u32 %v716, %v717
        %v719 = vshll.u32 2475754826, %v713
        %v720 = vshrl.u32 2131351028, %v714
        %v721 = vor.u32 %v719, %v720
        %v722 = vshll.u32 2131351028, %v713
        %v723 = vshrl.u32 2102212464, %v714
        %v724 = vor.u32 %v722, %v723
        %v725 = vshll.u32 2102212464, %v713
        %v726 = vshrl.u32 920167782, %v714
        %v727 = vor.u32 %v725, %v726
        %v728 = vshll.u32 920167782, %v713
        %v729 = vshrl.u32 1326507024, %v714
        %v730 = vor.u32 %v728, %v729
        %vm731 = vcmp.lt.s32.totalorder %v712, 1
        %vm732 = vcmp.lt.s32.totalorder %v712, 2
        %vm733 = vcmp.lt.s32.totalorder %v712, 3
        %vm734 = vcmp.lt.s32.totalorder %v712, 4
        %v735 = vsel %vm731, %v715, %v718
        %v736 = vsel %vm734, %v724, 2102212464
        %v737 = vsel %vm733, %v721, %v736
        %v738 = vsel %vm732, %v735, %v737
        %v739 = vsel %vm731, %v718, %v721
        %v740 = vsel %vm734, %v727, 920167782
        %v741 = vsel %vm733, %v724, %v740
        %v742 = vsel %vm732, %v739, %v741
        %v743 = vsel %vm731, %v721, %v724
        %v744 = vsel %vm734, %v730, 1326507024
        %v745 = vsel %vm733, %v727, %v744
        %v746 = vsel %vm732, %v743, %v745
        %v747 = vshll.u32 %v707, 8
        %v748 = vmul.u32.u64.compose %v747, %v746
        %v749 = vextract.low.u32 %v748
        %v750 = vextract.high.u32 %v748
        %v751 = vmul.u32.u64.compose %v747, %v742
        %v752 = vextract.low.u32 %v751
        %v753 = vextract.high.u32 %v751
        %v754 = vmul.u32 %v747, %v738
        %v755 = vadd.s32 %v750, %v752
        %vm756 = vc.u32 %v750, %v752
        %v757 = vadd.s32 %v753, 1
        %v758 = vsel %vm756, %v757, %v753
        %v759 = vadd.s32 %v754, %v758
        %v760 = vadd.s32 %v759, 536870912
        %v761 = vshrl.u32 %v760, 30
        %v762 = vshll.u32 %v761, 30
        %v763 = vsub.s32 %v759, %v762
        %vm764 = vcmp.lt.s32.totalorder %v763, 0
        %v765 = vsub.s32 0, %v763
        %v766 = vsel %vm764, %v765, %v763
        %v767 = vclz %v766
        %v768 = vsub.s32 %v767, 2
        %vm769 = vcmp.gt.s32.totalorder 0, %v768
        %v770 = vsel %vm769, 0, %v768
        %v771 = vsub.s32 32, %v770
        %v772 = vshll.u32 %v763, %v770
        %v773 = vshrl.u32 %v755, %v771
        %v774 = vor.u32 %v772, %v773
        %v775 = vsub.s32 4294967266, %v770
        %v776 = vadd.s32 %v775, 127
        %v777 = vshll.u32 %v776, 23
        %v778 = vor.u32 4788187, %v777
        %v779 = vand.u32 2147483647, %v778
        %v781 = vcvt.s32.f32 %v774
        %v782 = vmul.f32 %v781, %v779
        %v783 = vxor.u32 %v782, 2147483648
        %v784 = vsel %vm701, %v783, %v782
        %v785 = vsub.s32 4, %v761
        %v786 = vsel %vm701, %v785, %v761
        %v787 = vsel %vm700, %v181, %v784
        %v788 = vsel %vm700, 0, %v786
        %v789 = vcosq.f32.pop %v787
        %v790 = vsinq.f32.pop %v787
        %vm791 = vweird.f32 %v181
        %v792 = vand.u32 %v788, 3
        %vm793 = vcmp.lt.s32.totalorder %v792, 2
        %vm794 = vcmp.eq.s32.totalorder %v792, 0
        %v795 = vxor.u32 %v790, 2147483648
        %v796 = vsel %vm794, %v789, %v795
        %vm797 = vcmp.eq.s32.totalorder %v792, 2
        %v798 = vxor.u32 %v789, 2147483648
        %v799 = vsel %vm797, %v798, %v790
        %v800 = vsel %vm793, %v796, %v799
        %v801 = vsel %vm791, nan, %v800
        %v802 = vand.u32 2147483647, %v182
        %vm803 = vcmp.le.f32.partialorder %v802, 0.7853982
        %vm804 = vcmp.lt.s32.totalorder %v182, 0
        %v805 = vand.u32 %v182, 2139095040
        %v806 = vshrl.u32 %v805, 23
        %v807 = vsub.s32 %v806, 127
        %v808 = vand.u32 2147483647, %v182
        %v809 = vand.u32 %v808, 8388607
        %v810 = vor.u32 %v809, 8388608
        %v811 = vsub.s32 0, %v810
        %v812 = vadd.s32 %v807, 1
        %vm813 = vcmp.gt.s32.totalorder %v812, 0
        %v814 = vsel %vm813, %v812, 0
        %v815 = vshrl.u32 %v814, 5
        %v816 = vand.u32 %v814, 31
        %v817 = vsub.s32 32, %v816
        %v818 = vshrl.u32 683565275, %v817
        %v819 = vshll.u32 683565275, %v816
        %v820 = vshrl.u32 2475754826, %v817
        %v821 = vor.u32 %v819, %v820
        %v822 = vshll.u32 2475754826, %v816
        %v823 = vshrl.u32 2131351028, %v817
        %v824 = vor.u32 %v822, %v823
        %v825 = vshll.u32 2131351028, %v816
        %v826 = vshrl.u32 2102212464, %v817
        %v827 = vor.u32 %v825, %v826
        %v828 = vshll.u32 2102212464, %v816
        %v829 = vshrl.u32 920167782, %v817
        %v830 = vor.u32 %v828, %v829
        %v831 = vshll.u32 920167782, %v816
        %v832 = vshrl.u32 1326507024, %v817
        %v833 = vor.u32 %v831, %v832
        %vm834 = vcmp.lt.s32.totalorder %v815, 1
        %vm835 = vcmp.lt.s32.totalorder %v815, 2
        %vm836 = vcmp.lt.s32.totalorder %v815, 3
        %vm837 = vcmp.lt.s32.totalorder %v815, 4
        %v838 = vsel %vm834, %v818, %v821
        %v839 = vsel %vm837, %v827, 2102212464
        %v840 = vsel %vm836, %v824, %v839
        %v841 = vsel %vm835, %v838, %v840
        %v842 = vsel %vm834, %v821, %v824
        %v843 = vsel %vm837, %v830, 920167782
        %v844 = vsel %vm836, %v827, %v843
        %v845 = vsel %vm835, %v842, %v844
        %v846 = vsel %vm834, %v824, %v827
        %v847 = vsel %vm837, %v833, 1326507024
        %v848 = vsel %vm836, %v830, %v847
        %v849 = vsel %vm835, %v846, %v848
        %v850 = vshll.u32 %v810, 8
        %v851 = vmul.u32.u64.compose %v850, %v849
        %v852 = vextract.low.u32 %v851
        %v853 = vextract.high.u32 %v851
        %v854 = vmul.u32.u64.compose %v850, %v845
        %v855 = vextract.low.u32 %v854
        %v856 = vextract.high.u32 %v854
        %v857 = vmul.u32 %v850, %v841
        %v858 = vadd.s32 %v853, %v855
        %vm859 = vc.u32 %v853, %v855
        %v860 = vadd.s32 %v856, 1
        %v861 = vsel %vm859, %v860, %v856
        %v862 = vadd.s32 %v857, %v861
        %v863 = vadd.s32 %v862, 536870912
        %v864 = vshrl.u32 %v863, 30
        %v865 = vshll.u32 %v864, 30
        %v866 = vsub.s32 %v862, %v865
        %vm867 = vcmp.lt.s32.totalorder %v866, 0
        %v868 = vsub.s32 0, %v866
        %v869 = vsel %vm867, %v868, %v866
        %v870 = vclz %v869
        %v871 = vsub.s32 %v870, 2
        %vm872 = vcmp.gt.s32.totalorder 0, %v871
        %v873 = vsel %vm872, 0, %v871
        %v874 = vsub.s32 32, %v873
        %v875 = vshll.u32 %v866, %v873
        %v876 = vshrl.u32 %v858, %v874
        %v877 = vor.u32 %v875, %v876
        %v878 = vsub.s32 4294967266, %v873
        %v879 = vadd.s32 %v878, 127
        %v880 = vshll.u32 %v879, 23
        %v881 = vor.u32 4788187, %v880
        %v882 = vand.u32 2147483647, %v881
        %v884 = vcvt.s32.f32 %v877
        %v885 = vmul.f32 %v884, %v882
        %v886 = vxor.u32 %v885, 2147483648
        %v887 = vsel %vm804, %v886, %v885
        %v888 = vsub.s32 4, %v864
        %v889 = vsel %vm804, %v888, %v864
        %v890 = vsel %vm803, %v182, %v887
        %v891 = vsel %vm803, 0, %v889
        %v892 = vcosq.f32.pop %v890
        %v893 = vsinq.f32.pop %v890
        %vm894 = vweird.f32 %v182
        %v895 = vand.u32 %v891, 3
        %vm896 = vcmp.lt.s32.totalorder %v895, 2
        %vm897 = vcmp.eq.s32.totalorder %v895, 0
        %v898 = vxor.u32 %v893, 2147483648
        %v899 = vsel %vm897, %v892, %v898
        %vm900 = vcmp.eq.s32.totalorder %v895, 2
        %v901 = vxor.u32 %v892, 2147483648
        %v902 = vsel %vm900, %v901, %v893
        %v903 = vsel %vm896, %v899, %v902
        %v904 = vsel %vm894, nan, %v903
        %v905 = vand.u32 2147483647, %v183
        %vm906 = vcmp.le.f32.partialorder %v905, 0.7853982
        %vm907 = vcmp.lt.s32.totalorder %v183, 0
        %v908 = vand.u32 %v183, 2139095040
        %v909 = vshrl.u32 %v908, 23
        %v910 = vsub.s32 %v909, 127
        %v911 = vand.u32 2147483647, %v183
        %v912 = vand.u32 %v911, 8388607
        %v913 = vor.u32 %v912, 8388608
        %v914 = vsub.s32 0, %v913
        %v915 = vadd.s32 %v910, 1
        %vm916 = vcmp.gt.s32.totalorder %v915, 0
        %v917 = vsel %vm916, %v915, 0
        %v918 = vshrl.u32 %v917, 5
        %v919 = vand.u32 %v917, 31
        %v920 = vsub.s32 32, %v919
        %v921 = vshrl.u32 683565275, %v920
        %v922 = vshll.u32 683565275, %v919
        %v923 = vshrl.u32 2475754826, %v920
        %v924 = vor.u32 %v922, %v923
        %v925 = vshll.u32 2475754826, %v919
        %v926 = vshrl.u32 2131351028, %v920
        %v927 = vor.u32 %v925, %v926
        %v928 = vshll.u32 2131351028, %v919
        %v929 = vshrl.u32 2102212464, %v920
        %v930 = vor.u32 %v928, %v929
        %v931 = vshll.u32 2102212464, %v919
        %v932 = vshrl.u32 920167782, %v920
        %v933 = vor.u32 %v931, %v932
        %v934 = vshll.u32 920167782, %v919
        %v935 = vshrl.u32 1326507024, %v920
        %v936 = vor.u32 %v934, %v935
        %vm937 = vcmp.lt.s32.totalorder %v918, 1
        %vm938 = vcmp.lt.s32.totalorder %v918, 2
        %vm939 = vcmp.lt.s32.totalorder %v918, 3
        %vm940 = vcmp.lt.s32.totalorder %v918, 4
        %v941 = vsel %vm937, %v921, %v924
        %v942 = vsel %vm940, %v930, 2102212464
        %v943 = vsel %vm939, %v927, %v942
        %v944 = vsel %vm938, %v941, %v943
        %v945 = vsel %vm937, %v924, %v927
        %v946 = vsel %vm940, %v933, 920167782
        %v947 = vsel %vm939, %v930, %v946
        %v948 = vsel %vm938, %v945, %v947
        %v949 = vsel %vm937, %v927, %v930
        %v950 = vsel %vm940, %v936, 1326507024
        %v951 = vsel %vm939, %v933, %v950
        %v952 = vsel %vm938, %v949, %v951
        %v953 = vshll.u32 %v913, 8
        %v954 = vmul.u32.u64.compose %v953, %v952
        %v955 = vextract.low.u32 %v954
        %v956 = vextract.high.u32 %v954
        %v957 = vmul.u32.u64.compose %v953, %v948
        %v958 = vextract.low.u32 %v957
        %v959 = vextract.high.u32 %v957
        %v960 = vmul.u32 %v953, %v944
        %v961 = vadd.s32 %v956, %v958
        %vm962 = vc.u32 %v956, %v958
        %v963 = vadd.s32 %v959, 1
        %v964 = vsel %vm962, %v963, %v959
        %v965 = vadd.s32 %v960, %v964
        %v966 = vadd.s32 %v965, 536870912
        %v967 = vshrl.u32 %v966, 30
        %v968 = vshll.u32 %v967, 30
        %v969 = vsub.s32 %v965, %v968
        %vm970 = vcmp.lt.s32.totalorder %v969, 0
        %v971 = vsub.s32 0, %v969
        %v972 = vsel %vm970, %v971, %v969
        %v973 = vclz %v972
        %v974 = vsub.s32 %v973, 2
        %vm975 = vcmp.gt.s32.totalorder 0, %v974
        %v976 = vsel %vm975, 0, %v974
        %v977 = vsub.s32 32, %v976
        %v978 = vshll.u32 %v969, %v976
        %v979 = vshrl.u32 %v961, %v977
        %v980 = vor.u32 %v978, %v979
        %v981 = vsub.s32 4294967266, %v976
        %v982 = vadd.s32 %v981, 127
        %v983 = vshll.u32 %v982, 23
        %v984 = vor.u32 4788187, %v983
        %v985 = vand.u32 2147483647, %v984
        %v987 = vcvt.s32.f32 %v980
        %v988 = vmul.f32 %v987, %v985
        %v989 = vxor.u32 %v988, 2147483648
        %v990 = vsel %vm907, %v989, %v988
        %v991 = vsub.s32 4, %v967
        %v992 = vsel %vm907, %v991, %v967
        %v993 = vsel %vm906, %v183, %v990
        %v994 = vsel %vm906, 0, %v992
        %v995 = vcosq.f32.pop %v993
        %v996 = vsinq.f32.pop %v993
        %vm997 = vweird.f32 %v183
        %v998 = vand.u32 %v994, 3
        %vm999 = vcmp.lt.s32.totalorder %v998, 2
        %vm1000 = vcmp.eq.s32.totalorder %v998, 0
        %v1001 = vxor.u32 %v996, 2147483648
        %v1002 = vsel %vm1000, %v995, %v1001
        %vm1003 = vcmp.eq.s32.totalorder %v998, 2
        %v1004 = vxor.u32 %v995, 2147483648
        %v1005 = vsel %vm1003, %v1004, %v996
        %v1006 = vsel %vm999, %v1002, %v1005
        %v1007 = vsel %vm997, nan, %v1006
        %v1008 = vand.u32 2147483647, %v176
        %vm1009 = vcmp.le.f32.partialorder %v1008, 0.7853982
        %vm1010 = vcmp.lt.s32.totalorder %v176, 0
        %v1011 = vand.u32 %v176, 2139095040
        %v1012 = vshrl.u32 %v1011, 23
        %v1013 = vsub.s32 %v1012, 127
        %v1014 = vand.u32 2147483647, %v176
        %v1015 = vand.u32 %v1014, 8388607
        %v1016 = vor.u32 %v1015, 8388608
        %v1017 = vsub.s32 0, %v1016
        %v1018 = vadd.s32 %v1013, 1
        %vm1019 = vcmp.gt.s32.totalorder %v1018, 0
        %v1020 = vsel %vm1019, %v1018, 0
        %v1021 = vshrl.u32 %v1020, 5
        %v1022 = vand.u32 %v1020, 31
        %v1023 = vsub.s32 32, %v1022
        %v1024 = vshrl.u32 683565275, %v1023
        %v1025 = vshll.u32 683565275, %v1022
        %v1026 = vshrl.u32 2475754826, %v1023
        %v1027 = vor.u32 %v1025, %v1026
        %v1028 = vshll.u32 2475754826, %v1022
        %v1029 = vshrl.u32 2131351028, %v1023
        %v1030 = vor.u32 %v1028, %v1029
        %v1031 = vshll.u32 2131351028, %v1022
        %v1032 = vshrl.u32 2102212464, %v1023
        %v1033 = vor.u32 %v1031, %v1032
        %v1034 = vshll.u32 2102212464, %v1022
        %v1035 = vshrl.u32 920167782, %v1023
        %v1036 = vor.u32 %v1034, %v1035
        %v1037 = vshll.u32 920167782, %v1022
        %v1038 = vshrl.u32 1326507024, %v1023
        %v1039 = vor.u32 %v1037, %v1038
        %vm1040 = vcmp.lt.s32.totalorder %v1021, 1
        %vm1041 = vcmp.lt.s32.totalorder %v1021, 2
        %vm1042 = vcmp.lt.s32.totalorder %v1021, 3
        %vm1043 = vcmp.lt.s32.totalorder %v1021, 4
        %v1044 = vsel %vm1040, %v1024, %v1027
        %v1045 = vsel %vm1043, %v1033, 2102212464
        %v1046 = vsel %vm1042, %v1030, %v1045
        %v1047 = vsel %vm1041, %v1044, %v1046
        %v1048 = vsel %vm1040, %v1027, %v1030
        %v1049 = vsel %vm1043, %v1036, 920167782
        %v1050 = vsel %vm1042, %v1033, %v1049
        %v1051 = vsel %vm1041, %v1048, %v1050
        %v1052 = vsel %vm1040, %v1030, %v1033
        %v1053 = vsel %vm1043, %v1039, 1326507024
        %v1054 = vsel %vm1042, %v1036, %v1053
        %v1055 = vsel %vm1041, %v1052, %v1054
        %v1056 = vshll.u32 %v1016, 8
        %v1057 = vmul.u32.u64.compose %v1056, %v1055
        %v1058 = vextract.low.u32 %v1057
        %v1059 = vextract.high.u32 %v1057
        %v1060 = vmul.u32.u64.compose %v1056, %v1051
        %v1061 = vextract.low.u32 %v1060
        %v1062 = vextract.high.u32 %v1060
        %v1063 = vmul.u32 %v1056, %v1047
        %v1064 = vadd.s32 %v1059, %v1061
        %vm1065 = vc.u32 %v1059, %v1061
        %v1066 = vadd.s32 %v1062, 1
        %v1067 = vsel %vm1065, %v1066, %v1062
        %v1068 = vadd.s32 %v1063, %v1067
        %v1069 = vadd.s32 %v1068, 536870912
        %v1070 = vshrl.u32 %v1069, 30
        %v1071 = vshll.u32 %v1070, 30
        %v1072 = vsub.s32 %v1068, %v1071
        %vm1073 = vcmp.lt.s32.totalorder %v1072, 0
        %v1074 = vsub.s32 0, %v1072
        %v1075 = vsel %vm1073, %v1074, %v1072
        %v1076 = vclz %v1075
        %v1077 = vsub.s32 %v1076, 2
        %vm1078 = vcmp.gt.s32.totalorder 0, %v1077
        %v1079 = vsel %vm1078, 0, %v1077
        %v1080 = vsub.s32 32, %v1079
        %v1081 = vshll.u32 %v1072, %v1079
        %v1082 = vshrl.u32 %v1064, %v1080
        %v1083 = vor.u32 %v1081, %v1082
        %v1084 = vsub.s32 4294967266, %v1079
        %v1085 = vadd.s32 %v1084, 127
        %v1086 = vshll.u32 %v1085, 23
        %v1087 = vor.u32 4788187, %v1086
        %v1088 = vand.u32 2147483647, %v1087
        %v1090 = vcvt.s32.f32 %v1083
        %v1091 = vmul.f32 %v1090, %v1088
        %v1092 = vxor.u32 %v1091, 2147483648
        %v1093 = vsel %vm1010, %v1092, %v1091
        %v1094 = vsub.s32 4, %v1070
        %v1095 = vsel %vm1010, %v1094, %v1070
        %v1096 = vsel %vm1009, %v176, %v1093
        %v1097 = vsel %vm1009, 0, %v1095
        %v1098 = vcosq.f32.pop %v1096
        %v1099 = vsinq.f32.pop %v1096
        %vm1100 = vweird.f32 %v176
        %v1101 = vadd.s32 %v1097, 3
        %v1102 = vand.u32 %v1101, 3
        %vm1103 = vcmp.lt.s32.totalorder %v1102, 2
        %vm1104 = vcmp.eq.s32.totalorder %v1102, 0
        %v1105 = vxor.u32 %v1099, 2147483648
        %v1106 = vsel %vm1104, %v1098, %v1105
        %vm1107 = vcmp.eq.s32.totalorder %v1102, 2
        %v1108 = vxor.u32 %v1098, 2147483648
        %v1109 = vsel %vm1107, %v1108, %v1099
        %v1110 = vsel %vm1103, %v1106, %v1109
        %v1111 = vsel %vm1100, nan, %v1110
        %v1112 = vand.u32 2147483647, %v177
        %vm1113 = vcmp.le.f32.partialorder %v1112, 0.7853982
        %vm1114 = vcmp.lt.s32.totalorder %v177, 0
        %v1115 = vand.u32 %v177, 2139095040
        %v1116 = vshrl.u32 %v1115, 23
        %v1117 = vsub.s32 %v1116, 127
        %v1118 = vand.u32 2147483647, %v177
        %v1119 = vand.u32 %v1118, 8388607
        %v1120 = vor.u32 %v1119, 8388608
        %v1121 = vsub.s32 0, %v1120
        %v1122 = vadd.s32 %v1117, 1
        %vm1123 = vcmp.gt.s32.totalorder %v1122, 0
        %v1124 = vsel %vm1123, %v1122, 0
        %v1125 = vshrl.u32 %v1124, 5
        %v1126 = vand.u32 %v1124, 31
        %v1127 = vsub.s32 32, %v1126
        %v1128 = vshrl.u32 683565275, %v1127
        %v1129 = vshll.u32 683565275, %v1126
        %v1130 = vshrl.u32 2475754826, %v1127
        %v1131 = vor.u32 %v1129, %v1130
        %v1132 = vshll.u32 2475754826, %v1126
        %v1133 = vshrl.u32 2131351028, %v1127
        %v1134 = vor.u32 %v1132, %v1133
        %v1135 = vshll.u32 2131351028, %v1126
        %v1136 = vshrl.u32 2102212464, %v1127
        %v1137 = vor.u32 %v1135, %v1136
        %v1138 = vshll.u32 2102212464, %v1126
        %v1139 = vshrl.u32 920167782, %v1127
        %v1140 = vor.u32 %v1138, %v1139
        %v1141 = vshll.u32 920167782, %v1126
        %v1142 = vshrl.u32 1326507024, %v1127
        %v1143 = vor.u32 %v1141, %v1142
        %vm1144 = vcmp.lt.s32.totalorder %v1125, 1
        %vm1145 = vcmp.lt.s32.totalorder %v1125, 2
        %vm1146 = vcmp.lt.s32.totalorder %v1125, 3
        %vm1147 = vcmp.lt.s32.totalorder %v1125, 4
        %v1148 = vsel %vm1144, %v1128, %v1131
        %v1149 = vsel %vm1147, %v1137, 2102212464
        %v1150 = vsel %vm1146, %v1134, %v1149
        %v1151 = vsel %vm1145, %v1148, %v1150
        %v1152 = vsel %vm1144, %v1131, %v1134
        %v1153 = vsel %vm1147, %v1140, 920167782
        %v1154 = vsel %vm1146, %v1137, %v1153
        %v1155 = vsel %vm1145, %v1152, %v1154
        %v1156 = vsel %vm1144, %v1134, %v1137
        %v1157 = vsel %vm1147, %v1143, 1326507024
        %v1158 = vsel %vm1146, %v1140, %v1157
        %v1159 = vsel %vm1145, %v1156, %v1158
        %v1160 = vshll.u32 %v1120, 8
        %v1161 = vmul.u32.u64.compose %v1160, %v1159
        %v1162 = vextract.low.u32 %v1161
        %v1163 = vextract.high.u32 %v1161
        %v1164 = vmul.u32.u64.compose %v1160, %v1155
        %v1165 = vextract.low.u32 %v1164
        %v1166 = vextract.high.u32 %v1164
        %v1167 = vmul.u32 %v1160, %v1151
        %v1168 = vadd.s32 %v1163, %v1165
        %vm1169 = vc.u32 %v1163, %v1165
        %v1170 = vadd.s32 %v1166, 1
        %v1171 = vsel %vm1169, %v1170, %v1166
        %v1172 = vadd.s32 %v1167, %v1171
        %v1173 = vadd.s32 %v1172, 536870912
        %v1174 = vshrl.u32 %v1173, 30
        %v1175 = vshll.u32 %v1174, 30
        %v1176 = vsub.s32 %v1172, %v1175
        %vm1177 = vcmp.lt.s32.totalorder %v1176, 0
        %v1178 = vsub.s32 0, %v1176
        %v1179 = vsel %vm1177, %v1178, %v1176
        %v1180 = vclz %v1179
        %v1181 = vsub.s32 %v1180, 2
        %vm1182 = vcmp.gt.s32.totalorder 0, %v1181
        %v1183 = vsel %vm1182, 0, %v1181
        %v1184 = vsub.s32 32, %v1183
        %v1185 = vshll.u32 %v1176, %v1183
        %v1186 = vshrl.u32 %v1168, %v1184
        %v1187 = vor.u32 %v1185, %v1186
        %v1188 = vsub.s32 4294967266, %v1183
        %v1189 = vadd.s32 %v1188, 127
        %v1190 = vshll.u32 %v1189, 23
        %v1191 = vor.u32 4788187, %v1190
        %v1192 = vand.u32 2147483647, %v1191
        %v1194 = vcvt.s32.f32 %v1187
        %v1195 = vmul.f32 %v1194, %v1192
        %v1196 = vxor.u32 %v1195, 2147483648
        %v1197 = vsel %vm1114, %v1196, %v1195
        %v1198 = vsub.s32 4, %v1174
        %v1199 = vsel %vm1114, %v1198, %v1174
        %v1200 = vsel %vm1113, %v177, %v1197
        %v1201 = vsel %vm1113, 0, %v1199
        %v1202 = vcosq.f32.pop %v1200
        %v1203 = vsinq.f32.pop %v1200
        %vm1204 = vweird.f32 %v177
        %v1205 = vadd.s32 %v1201, 3
        %v1206 = vand.u32 %v1205, 3
        %vm1207 = vcmp.lt.s32.totalorder %v1206, 2
        %vm1208 = vcmp.eq.s32.totalorder %v1206, 0
        %v1209 = vxor.u32 %v1203, 2147483648
        %v1210 = vsel %vm1208, %v1202, %v1209
        %vm1211 = vcmp.eq.s32.totalorder %v1206, 2
        %v1212 = vxor.u32 %v1202, 2147483648
        %v1213 = vsel %vm1211, %v1212, %v1203
        %v1214 = vsel %vm1207, %v1210, %v1213
        %v1215 = vsel %vm1204, nan, %v1214
        %v1216 = vand.u32 2147483647, %v178
        %vm1217 = vcmp.le.f32.partialorder %v1216, 0.7853982
        %vm1218 = vcmp.lt.s32.totalorder %v178, 0
        %v1219 = vand.u32 %v178, 2139095040
        %v1220 = vshrl.u32 %v1219, 23
        %v1221 = vsub.s32 %v1220, 127
        %v1222 = vand.u32 2147483647, %v178
        %v1223 = vand.u32 %v1222, 8388607
        %v1224 = vor.u32 %v1223, 8388608
        %v1225 = vsub.s32 0, %v1224
        %v1226 = vadd.s32 %v1221, 1
        %vm1227 = vcmp.gt.s32.totalorder %v1226, 0
        %v1228 = vsel %vm1227, %v1226, 0
        %v1229 = vshrl.u32 %v1228, 5
        %v1230 = vand.u32 %v1228, 31
        %v1231 = vsub.s32 32, %v1230
        %v1232 = vshrl.u32 683565275, %v1231
        %v1233 = vshll.u32 683565275, %v1230
        %v1234 = vshrl.u32 2475754826, %v1231
        %v1235 = vor.u32 %v1233, %v1234
        %v1236 = vshll.u32 2475754826, %v1230
        %v1237 = vshrl.u32 2131351028, %v1231
        %v1238 = vor.u32 %v1236, %v1237
        %v1239 = vshll.u32 2131351028, %v1230
        %v1240 = vshrl.u32 2102212464, %v1231
        %v1241 = vor.u32 %v1239, %v1240
        %v1242 = vshll.u32 2102212464, %v1230
        %v1243 = vshrl.u32 920167782, %v1231
        %v1244 = vor.u32 %v1242, %v1243
        %v1245 = vshll.u32 920167782, %v1230
        %v1246 = vshrl.u32 1326507024, %v1231
        %v1247 = vor.u32 %v1245, %v1246
        %vm1248 = vcmp.lt.s32.totalorder %v1229, 1
        %vm1249 = vcmp.lt.s32.totalorder %v1229, 2
        %vm1250 = vcmp.lt.s32.totalorder %v1229, 3
        %vm1251 = vcmp.lt.s32.totalorder %v1229, 4
        %v1252 = vsel %vm1248, %v1232, %v1235
        %v1253 = vsel %vm1251, %v1241, 2102212464
        %v1254 = vsel %vm1250, %v1238, %v1253
        %v1255 = vsel %vm1249, %v1252, %v1254
        %v1256 = vsel %vm1248, %v1235, %v1238
        %v1257 = vsel %vm1251, %v1244, 920167782
        %v1258 = vsel %vm1250, %v1241, %v1257
        %v1259 = vsel %vm1249, %v1256, %v1258
        %v1260 = vsel %vm1248, %v1238, %v1241
        %v1261 = vsel %vm1251, %v1247, 1326507024
        %v1262 = vsel %vm1250, %v1244, %v1261
        %v1263 = vsel %vm1249, %v1260, %v1262
        %v1264 = vshll.u32 %v1224, 8
        %v1265 = vmul.u32.u64.compose %v1264, %v1263
        %v1266 = vextract.low.u32 %v1265
        %v1267 = vextract.high.u32 %v1265
        %v1268 = vmul.u32.u64.compose %v1264, %v1259
        %v1269 = vextract.low.u32 %v1268
        %v1270 = vextract.high.u32 %v1268
        %v1271 = vmul.u32 %v1264, %v1255
        %v1272 = vadd.s32 %v1267, %v1269
        %vm1273 = vc.u32 %v1267, %v1269
        %v1274 = vadd.s32 %v1270, 1
        %v1275 = vsel %vm1273, %v1274, %v1270
        %v1276 = vadd.s32 %v1271, %v1275
        %v1277 = vadd.s32 %v1276, 536870912
        %v1278 = vshrl.u32 %v1277, 30
        %v1279 = vshll.u32 %v1278, 30
        %v1280 = vsub.s32 %v1276, %v1279
        %vm1281 = vcmp.lt.s32.totalorder %v1280, 0
        %v1282 = vsub.s32 0, %v1280
        %v1283 = vsel %vm1281, %v1282, %v1280
        %v1284 = vclz %v1283
        %v1285 = vsub.s32 %v1284, 2
        %vm1286 = vcmp.gt.s32.totalorder 0, %v1285
        %v1287 = vsel %vm1286, 0, %v1285
        %v1288 = vsub.s32 32, %v1287
        %v1289 = vshll.u32 %v1280, %v1287
        %v1290 = vshrl.u32 %v1272, %v1288
        %v1291 = vor.u32 %v1289, %v1290
        %v1292 = vsub.s32 4294967266, %v1287
        %v1293 = vadd.s32 %v1292, 127
        %v1294 = vshll.u32 %v1293, 23
        %v1295 = vor.u32 4788187, %v1294
        %v1296 = vand.u32 2147483647, %v1295
        %v1298 = vcvt.s32.f32 %v1291
        %v1299 = vmul.f32 %v1298, %v1296
        %v1300 = vxor.u32 %v1299, 2147483648
        %v1301 = vsel %vm1218, %v1300, %v1299
        %v1302 = vsub.s32 4, %v1278
        %v1303 = vsel %vm1218, %v1302, %v1278
        %v1304 = vsel %vm1217, %v178, %v1301
        %v1305 = vsel %vm1217, 0, %v1303
        %v1306 = vcosq.f32.pop %v1304
        %v1307 = vsinq.f32.pop %v1304
        %vm1308 = vweird.f32 %v178
        %v1309 = vadd.s32 %v1305, 3
        %v1310 = vand.u32 %v1309, 3
        %vm1311 = vcmp.lt.s32.totalorder %v1310, 2
        %vm1312 = vcmp.eq.s32.totalorder %v1310, 0
        %v1313 = vxor.u32 %v1307, 2147483648
        %v1314 = vsel %vm1312, %v1306, %v1313
        %vm1315 = vcmp.eq.s32.totalorder %v1310, 2
        %v1316 = vxor.u32 %v1306, 2147483648
        %v1317 = vsel %vm1315, %v1316, %v1307
        %v1318 = vsel %vm1311, %v1314, %v1317
        %v1319 = vsel %vm1308, nan, %v1318
        %v1320 = vand.u32 2147483647, %v179
        %vm1321 = vcmp.le.f32.partialorder %v1320, 0.7853982
        %vm1322 = vcmp.lt.s32.totalorder %v179, 0
        %v1323 = vand.u32 %v179, 2139095040
        %v1324 = vshrl.u32 %v1323, 23
        %v1325 = vsub.s32 %v1324, 127
        %v1326 = vand.u32 2147483647, %v179
        %v1327 = vand.u32 %v1326, 8388607
        %v1328 = vor.u32 %v1327, 8388608
        %v1329 = vsub.s32 0, %v1328
        %v1330 = vadd.s32 %v1325, 1
        %vm1331 = vcmp.gt.s32.totalorder %v1330, 0
        %v1332 = vsel %vm1331, %v1330, 0
        %v1333 = vshrl.u32 %v1332, 5
        %v1334 = vand.u32 %v1332, 31
        %v1335 = vsub.s32 32, %v1334
        %v1336 = vshrl.u32 683565275, %v1335
        %v1337 = vshll.u32 683565275, %v1334
        %v1338 = vshrl.u32 2475754826, %v1335
        %v1339 = vor.u32 %v1337, %v1338
        %v1340 = vshll.u32 2475754826, %v1334
        %v1341 = vshrl.u32 2131351028, %v1335
        %v1342 = vor.u32 %v1340, %v1341
        %v1343 = vshll.u32 2131351028, %v1334
        %v1344 = vshrl.u32 2102212464, %v1335
        %v1345 = vor.u32 %v1343, %v1344
        %v1346 = vshll.u32 2102212464, %v1334
        %v1347 = vshrl.u32 920167782, %v1335
        %v1348 = vor.u32 %v1346, %v1347
        %v1349 = vshll.u32 920167782, %v1334
        %v1350 = vshrl.u32 1326507024, %v1335
        %v1351 = vor.u32 %v1349, %v1350
        %vm1352 = vcmp.lt.s32.totalorder %v1333, 1
        %vm1353 = vcmp.lt.s32.totalorder %v1333, 2
        %vm1354 = vcmp.lt.s32.totalorder %v1333, 3
        %vm1355 = vcmp.lt.s32.totalorder %v1333, 4
        %v1356 = vsel %vm1352, %v1336, %v1339
        %v1357 = vsel %vm1355, %v1345, 2102212464
        %v1358 = vsel %vm1354, %v1342, %v1357
        %v1359 = vsel %vm1353, %v1356, %v1358
        %v1360 = vsel %vm1352, %v1339, %v1342
        %v1361 = vsel %vm1355, %v1348, 920167782
        %v1362 = vsel %vm1354, %v1345, %v1361
        %v1363 = vsel %vm1353, %v1360, %v1362
        %v1364 = vsel %vm1352, %v1342, %v1345
        %v1365 = vsel %vm1355, %v1351, 1326507024
        %v1366 = vsel %vm1354, %v1348, %v1365
        %v1367 = vsel %vm1353, %v1364, %v1366
        %v1368 = vshll.u32 %v1328, 8
        %v1369 = vmul.u32.u64.compose %v1368, %v1367
        %v1370 = vextract.low.u32 %v1369
        %v1371 = vextract.high.u32 %v1369
        %v1372 = vmul.u32.u64.compose %v1368, %v1363
        %v1373 = vextract.low.u32 %v1372
        %v1374 = vextract.high.u32 %v1372
        %v1375 = vmul.u32 %v1368, %v1359
        %v1376 = vadd.s32 %v1371, %v1373
        %vm1377 = vc.u32 %v1371, %v1373
        %v1378 = vadd.s32 %v1374, 1
        %v1379 = vsel %vm1377, %v1378, %v1374
        %v1380 = vadd.s32 %v1375, %v1379
        %v1381 = vadd.s32 %v1380, 536870912
        %v1382 = vshrl.u32 %v1381, 30
        %v1383 = vshll.u32 %v1382, 30
        %v1384 = vsub.s32 %v1380, %v1383
        %vm1385 = vcmp.lt.s32.totalorder %v1384, 0
        %v1386 = vsub.s32 0, %v1384
        %v1387 = vsel %vm1385, %v1386, %v1384
        %v1388 = vclz %v1387
        %v1389 = vsub.s32 %v1388, 2
        %vm1390 = vcmp.gt.s32.totalorder 0, %v1389
        %v1391 = vsel %vm1390, 0, %v1389
        %v1392 = vsub.s32 32, %v1391
        %v1393 = vshll.u32 %v1384, %v1391
        %v1394 = vshrl.u32 %v1376, %v1392
        %v1395 = vor.u32 %v1393, %v1394
        %v1396 = vsub.s32 4294967266, %v1391
        %v1397 = vadd.s32 %v1396, 127
        %v1398 = vshll.u32 %v1397, 23
        %v1399 = vor.u32 4788187, %v1398
        %v1400 = vand.u32 2147483647, %v1399
        %v1402 = vcvt.s32.f32 %v1395
        %v1403 = vmul.f32 %v1402, %v1400
        %v1404 = vxor.u32 %v1403, 2147483648
        %v1405 = vsel %vm1322, %v1404, %v1403
        %v1406 = vsub.s32 4, %v1382
        %v1407 = vsel %vm1322, %v1406, %v1382
        %v1408 = vsel %vm1321, %v179, %v1405
        %v1409 = vsel %vm1321, 0, %v1407
        %v1410 = vcosq.f32.pop %v1408
        %v1411 = vsinq.f32.pop %v1408
        %vm1412 = vweird.f32 %v179
        %v1413 = vadd.s32 %v1409, 3
        %v1414 = vand.u32 %v1413, 3
        %vm1415 = vcmp.lt.s32.totalorder %v1414, 2
        %vm1416 = vcmp.eq.s32.totalorder %v1414, 0
        %v1417 = vxor.u32 %v1411, 2147483648
        %v1418 = vsel %vm1416, %v1410, %v1417
        %vm1419 = vcmp.eq.s32.totalorder %v1414, 2
        %v1420 = vxor.u32 %v1410, 2147483648
        %v1421 = vsel %vm1419, %v1420, %v1411
        %v1422 = vsel %vm1415, %v1418, %v1421
        %v1423 = vsel %vm1412, nan, %v1422
        %v1424 = vand.u32 2147483647, %v180
        %vm1425 = vcmp.le.f32.partialorder %v1424, 0.7853982
        %vm1426 = vcmp.lt.s32.totalorder %v180, 0
        %v1427 = vand.u32 %v180, 2139095040
        %v1428 = vshrl.u32 %v1427, 23
        %v1429 = vsub.s32 %v1428, 127
        %v1430 = vand.u32 2147483647, %v180
        %v1431 = vand.u32 %v1430, 8388607
        %v1432 = vor.u32 %v1431, 8388608
        %v1433 = vsub.s32 0, %v1432
        %v1434 = vadd.s32 %v1429, 1
        %vm1435 = vcmp.gt.s32.totalorder %v1434, 0
        %v1436 = vsel %vm1435, %v1434, 0
        %v1437 = vshrl.u32 %v1436, 5
        %v1438 = vand.u32 %v1436, 31
        %v1439 = vsub.s32 32, %v1438
        %v1440 = vshrl.u32 683565275, %v1439
        %v1441 = vshll.u32 683565275, %v1438
        %v1442 = vshrl.u32 2475754826, %v1439
        %v1443 = vor.u32 %v1441, %v1442
        %v1444 = vshll.u32 2475754826, %v1438
        %v1445 = vshrl.u32 2131351028, %v1439
        %v1446 = vor.u32 %v1444, %v1445
        %v1447 = vshll.u32 2131351028, %v1438
        %v1448 = vshrl.u32 2102212464, %v1439
        %v1449 = vor.u32 %v1447, %v1448
        %v1450 = vshll.u32 2102212464, %v1438
        %v1451 = vshrl.u32 920167782, %v1439
        %v1452 = vor.u32 %v1450, %v1451
        %v1453 = vshll.u32 920167782, %v1438
        %v1454 = vshrl.u32 1326507024, %v1439
        %v1455 = vor.u32 %v1453, %v1454
        %vm1456 = vcmp.lt.s32.totalorder %v1437, 1
        %vm1457 = vcmp.lt.s32.totalorder %v1437, 2
        %vm1458 = vcmp.lt.s32.totalorder %v1437, 3
        %vm1459 = vcmp.lt.s32.totalorder %v1437, 4
        %v1460 = vsel %vm1456, %v1440, %v1443
        %v1461 = vsel %vm1459, %v1449, 2102212464
        %v1462 = vsel %vm1458, %v1446, %v1461
        %v1463 = vsel %vm1457, %v1460, %v1462
        %v1464 = vsel %vm1456, %v1443, %v1446
        %v1465 = vsel %vm1459, %v1452, 920167782
        %v1466 = vsel %vm1458, %v1449, %v1465
        %v1467 = vsel %vm1457, %v1464, %v1466
        %v1468 = vsel %vm1456, %v1446, %v1449
        %v1469 = vsel %vm1459, %v1455, 1326507024
        %v1470 = vsel %vm1458, %v1452, %v1469
        %v1471 = vsel %vm1457, %v1468, %v1470
        %v1472 = vshll.u32 %v1432, 8
        %v1473 = vmul.u32.u64.compose %v1472, %v1471
        %v1474 = vextract.low.u32 %v1473
        %v1475 = vextract.high.u32 %v1473
        %v1476 = vmul.u32.u64.compose %v1472, %v1467
        %v1477 = vextract.low.u32 %v1476
        %v1478 = vextract.high.u32 %v1476
        %v1479 = vmul.u32 %v1472, %v1463
        %v1480 = vadd.s32 %v1475, %v1477
        %vm1481 = vc.u32 %v1475, %v1477
        %v1482 = vadd.s32 %v1478, 1
        %v1483 = vsel %vm1481, %v1482, %v1478
        %v1484 = vadd.s32 %v1479, %v1483
        %v1485 = vadd.s32 %v1484, 536870912
        %v1486 = vshrl.u32 %v1485, 30
        %v1487 = vshll.u32 %v1486, 30
        %v1488 = vsub.s32 %v1484, %v1487
        %vm1489 = vcmp.lt.s32.totalorder %v1488, 0
        %v1490 = vsub.s32 0, %v1488
        %v1491 = vsel %vm1489, %v1490, %v1488
        %v1492 = vclz %v1491
        %v1493 = vsub.s32 %v1492, 2
        %vm1494 = vcmp.gt.s32.totalorder 0, %v1493
        %v1495 = vsel %vm1494, 0, %v1493
        %v1496 = vsub.s32 32, %v1495
        %v1497 = vshll.u32 %v1488, %v1495
        %v1498 = vshrl.u32 %v1480, %v1496
        %v1499 = vor.u32 %v1497, %v1498
        %v1500 = vsub.s32 4294967266, %v1495
        %v1501 = vadd.s32 %v1500, 127
        %v1502 = vshll.u32 %v1501, 23
        %v1503 = vor.u32 4788187, %v1502
        %v1504 = vand.u32 2147483647, %v1503
        %v1506 = vcvt.s32.f32 %v1499
        %v1507 = vmul.f32 %v1506, %v1504
        %v1508 = vxor.u32 %v1507, 2147483648
        %v1509 = vsel %vm1426, %v1508, %v1507
        %v1510 = vsub.s32 4, %v1486
        %v1511 = vsel %vm1426, %v1510, %v1486
        %v1512 = vsel %vm1425, %v180, %v1509
        %v1513 = vsel %vm1425, 0, %v1511
        %v1514 = vcosq.f32.pop %v1512
        %v1515 = vsinq.f32.pop %v1512
        %vm1516 = vweird.f32 %v180
        %v1517 = vadd.s32 %v1513, 3
        %v1518 = vand.u32 %v1517, 3
        %vm1519 = vcmp.lt.s32.totalorder %v1518, 2
        %vm1520 = vcmp.eq.s32.totalorder %v1518, 0
        %v1521 = vxor.u32 %v1515, 2147483648
        %v1522 = vsel %vm1520, %v1514, %v1521
        %vm1523 = vcmp.eq.s32.totalorder %v1518, 2
        %v1524 = vxor.u32 %v1514, 2147483648
        %v1525 = vsel %vm1523, %v1524, %v1515
        %v1526 = vsel %vm1519, %v1522, %v1525
        %v1527 = vsel %vm1516, nan, %v1526
        %v1528 = vand.u32 2147483647, %v181
        %vm1529 = vcmp.le.f32.partialorder %v1528, 0.7853982
        %vm1530 = vcmp.lt.s32.totalorder %v181, 0
        %v1531 = vand.u32 %v181, 2139095040
        %v1532 = vshrl.u32 %v1531, 23
        %v1533 = vsub.s32 %v1532, 127
        %v1534 = vand.u32 2147483647, %v181
        %v1535 = vand.u32 %v1534, 8388607
        %v1536 = vor.u32 %v1535, 8388608
        %v1537 = vsub.s32 0, %v1536
        %v1538 = vadd.s32 %v1533, 1
        %vm1539 = vcmp.gt.s32.totalorder %v1538, 0
        %v1540 = vsel %vm1539, %v1538, 0
        %v1541 = vshrl.u32 %v1540, 5
        %v1542 = vand.u32 %v1540, 31
        %v1543 = vsub.s32 32, %v1542
        %v1544 = vshrl.u32 683565275, %v1543
        %v1545 = vshll.u32 683565275, %v1542
        %v1546 = vshrl.u32 2475754826, %v1543
        %v1547 = vor.u32 %v1545, %v1546
        %v1548 = vshll.u32 2475754826, %v1542
        %v1549 = vshrl.u32 2131351028, %v1543
        %v1550 = vor.u32 %v1548, %v1549
        %v1551 = vshll.u32 2131351028, %v1542
        %v1552 = vshrl.u32 2102212464, %v1543
        %v1553 = vor.u32 %v1551, %v1552
        %v1554 = vshll.u32 2102212464, %v1542
        %v1555 = vshrl.u32 920167782, %v1543
        %v1556 = vor.u32 %v1554, %v1555
        %v1557 = vshll.u32 920167782, %v1542
        %v1558 = vshrl.u32 1326507024, %v1543
        %v1559 = vor.u32 %v1557, %v1558
        %vm1560 = vcmp.lt.s32.totalorder %v1541, 1
        %vm1561 = vcmp.lt.s32.totalorder %v1541, 2
        %vm1562 = vcmp.lt.s32.totalorder %v1541, 3
        %vm1563 = vcmp.lt.s32.totalorder %v1541, 4
        %v1564 = vsel %vm1560, %v1544, %v1547
        %v1565 = vsel %vm1563, %v1553, 2102212464
        %v1566 = vsel %vm1562, %v1550, %v1565
        %v1567 = vsel %vm1561, %v1564, %v1566
        %v1568 = vsel %vm1560, %v1547, %v1550
        %v1569 = vsel %vm1563, %v1556, 920167782
        %v1570 = vsel %vm1562, %v1553, %v1569
        %v1571 = vsel %vm1561, %v1568, %v1570
        %v1572 = vsel %vm1560, %v1550, %v1553
        %v1573 = vsel %vm1563, %v1559, 1326507024
        %v1574 = vsel %vm1562, %v1556, %v1573
        %v1575 = vsel %vm1561, %v1572, %v1574
        %v1576 = vshll.u32 %v1536, 8
        %v1577 = vmul.u32.u64.compose %v1576, %v1575
        %v1578 = vextract.low.u32 %v1577
        %v1579 = vextract.high.u32 %v1577
        %v1580 = vmul.u32.u64.compose %v1576, %v1571
        %v1581 = vextract.low.u32 %v1580
        %v1582 = vextract.high.u32 %v1580
        %v1583 = vmul.u32 %v1576, %v1567
        %v1584 = vadd.s32 %v1579, %v1581
        %vm1585 = vc.u32 %v1579, %v1581
        %v1586 = vadd.s32 %v1582, 1
        %v1587 = vsel %vm1585, %v1586, %v1582
        %v1588 = vadd.s32 %v1583, %v1587
        %v1589 = vadd.s32 %v1588, 536870912
        %v1590 = vshrl.u32 %v1589, 30
        %v1591 = vshll.u32 %v1590, 30
        %v1592 = vsub.s32 %v1588, %v1591
        %vm1593 = vcmp.lt.s32.totalorder %v1592, 0
        %v1594 = vsub.s32 0, %v1592
        %v1595 = vsel %vm1593, %v1594, %v1592
        %v1596 = vclz %v1595
        %v1597 = vsub.s32 %v1596, 2
        %vm1598 = vcmp.gt.s32.totalorder 0, %v1597
        %v1599 = vsel %vm1598, 0, %v1597
        %v1600 = vsub.s32 32, %v1599
        %v1601 = vshll.u32 %v1592, %v1599
        %v1602 = vshrl.u32 %v1584, %v1600
        %v1603 = vor.u32 %v1601, %v1602
        %v1604 = vsub.s32 4294967266, %v1599
        %v1605 = vadd.s32 %v1604, 127
        %v1606 = vshll.u32 %v1605, 23
        %v1607 = vor.u32 4788187, %v1606
        %v1608 = vand.u32 2147483647, %v1607
        %v1610 = vcvt.s32.f32 %v1603
        %v1611 = vmul.f32 %v1610, %v1608
        %v1612 = vxor.u32 %v1611, 2147483648
        %v1613 = vsel %vm1530, %v1612, %v1611
        %v1614 = vsub.s32 4, %v1590
        %v1615 = vsel %vm1530, %v1614, %v1590
        %v1616 = vsel %vm1529, %v181, %v1613
        %v1617 = vsel %vm1529, 0, %v1615
        %v1618 = vcosq.f32.pop %v1616
        %v1619 = vsinq.f32.pop %v1616
        %vm1620 = vweird.f32 %v181
        %v1621 = vadd.s32 %v1617, 3
        %v1622 = vand.u32 %v1621, 3
        %vm1623 = vcmp.lt.s32.totalorder %v1622, 2
        %vm1624 = vcmp.eq.s32.totalorder %v1622, 0
        %v1625 = vxor.u32 %v1619, 2147483648
        %v1626 = vsel %vm1624, %v1618, %v1625
        %vm1627 = vcmp.eq.s32.totalorder %v1622, 2
        %v1628 = vxor.u32 %v1618, 2147483648
        %v1629 = vsel %vm1627, %v1628, %v1619
        %v1630 = vsel %vm1623, %v1626, %v1629
        %v1631 = vsel %vm1620, nan, %v1630
        %v1632 = vand.u32 2147483647, %v182
        %vm1633 = vcmp.le.f32.partialorder %v1632, 0.7853982
        %vm1634 = vcmp.lt.s32.totalorder %v182, 0
        %v1635 = vand.u32 %v182, 2139095040
        %v1636 = vshrl.u32 %v1635, 23
        %v1637 = vsub.s32 %v1636, 127
        %v1638 = vand.u32 2147483647, %v182
        %v1639 = vand.u32 %v1638, 8388607
        %v1640 = vor.u32 %v1639, 8388608
        %v1641 = vsub.s32 0, %v1640
        %v1642 = vadd.s32 %v1637, 1
        %vm1643 = vcmp.gt.s32.totalorder %v1642, 0
        %v1644 = vsel %vm1643, %v1642, 0
        %v1645 = vshrl.u32 %v1644, 5
        %v1646 = vand.u32 %v1644, 31
        %v1647 = vsub.s32 32, %v1646
        %v1648 = vshrl.u32 683565275, %v1647
        %v1649 = vshll.u32 683565275, %v1646
        %v1650 = vshrl.u32 2475754826, %v1647
        %v1651 = vor.u32 %v1649, %v1650
        %v1652 = vshll.u32 2475754826, %v1646
        %v1653 = vshrl.u32 2131351028, %v1647
        %v1654 = vor.u32 %v1652, %v1653
        %v1655 = vshll.u32 2131351028, %v1646
        %v1656 = vshrl.u32 2102212464, %v1647
        %v1657 = vor.u32 %v1655, %v1656
        %v1658 = vshll.u32 2102212464, %v1646
        %v1659 = vshrl.u32 920167782, %v1647
        %v1660 = vor.u32 %v1658, %v1659
        %v1661 = vshll.u32 920167782, %v1646
        %v1662 = vshrl.u32 1326507024, %v1647
        %v1663 = vor.u32 %v1661, %v1662
        %vm1664 = vcmp.lt.s32.totalorder %v1645, 1
        %vm1665 = vcmp.lt.s32.totalorder %v1645, 2
        %vm1666 = vcmp.lt.s32.totalorder %v1645, 3
        %vm1667 = vcmp.lt.s32.totalorder %v1645, 4
        %v1668 = vsel %vm1664, %v1648, %v1651
        %v1669 = vsel %vm1667, %v1657, 2102212464
        %v1670 = vsel %vm1666, %v1654, %v1669
        %v1671 = vsel %vm1665, %v1668, %v1670
        %v1672 = vsel %vm1664, %v1651, %v1654
        %v1673 = vsel %vm1667, %v1660, 920167782
        %v1674 = vsel %vm1666, %v1657, %v1673
        %v1675 = vsel %vm1665, %v1672, %v1674
        %v1676 = vsel %vm1664, %v1654, %v1657
        %v1677 = vsel %vm1667, %v1663, 1326507024
        %v1678 = vsel %vm1666, %v1660, %v1677
        %v1679 = vsel %vm1665, %v1676, %v1678
        %v1680 = vshll.u32 %v1640, 8
        %v1681 = vmul.u32.u64.compose %v1680, %v1679
        %v1682 = vextract.low.u32 %v1681
        %v1683 = vextract.high.u32 %v1681
        %v1684 = vmul.u32.u64.compose %v1680, %v1675
        %v1685 = vextract.low.u32 %v1684
        %v1686 = vextract.high.u32 %v1684
        %v1687 = vmul.u32 %v1680, %v1671
        %v1688 = vadd.s32 %v1683, %v1685
        %vm1689 = vc.u32 %v1683, %v1685
        %v1690 = vadd.s32 %v1686, 1
        %v1691 = vsel %vm1689, %v1690, %v1686
        %v1692 = vadd.s32 %v1687, %v1691
        %v1693 = vadd.s32 %v1692, 536870912
        %v1694 = vshrl.u32 %v1693, 30
        %v1695 = vshll.u32 %v1694, 30
        %v1696 = vsub.s32 %v1692, %v1695
        %vm1697 = vcmp.lt.s32.totalorder %v1696, 0
        %v1698 = vsub.s32 0, %v1696
        %v1699 = vsel %vm1697, %v1698, %v1696
        %v1700 = vclz %v1699
        %v1701 = vsub.s32 %v1700, 2
        %vm1702 = vcmp.gt.s32.totalorder 0, %v1701
        %v1703 = vsel %vm1702, 0, %v1701
        %v1704 = vsub.s32 32, %v1703
        %v1705 = vshll.u32 %v1696, %v1703
        %v1706 = vshrl.u32 %v1688, %v1704
        %v1707 = vor.u32 %v1705, %v1706
        %v1708 = vsub.s32 4294967266, %v1703
        %v1709 = vadd.s32 %v1708, 127
        %v1710 = vshll.u32 %v1709, 23
        %v1711 = vor.u32 4788187, %v1710
        %v1712 = vand.u32 2147483647, %v1711
        %v1714 = vcvt.s32.f32 %v1707
        %v1715 = vmul.f32 %v1714, %v1712
        %v1716 = vxor.u32 %v1715, 2147483648
        %v1717 = vsel %vm1634, %v1716, %v1715
        %v1718 = vsub.s32 4, %v1694
        %v1719 = vsel %vm1634, %v1718, %v1694
        %v1720 = vsel %vm1633, %v182, %v1717
        %v1721 = vsel %vm1633, 0, %v1719
        %v1722 = vcosq.f32.pop %v1720
        %v1723 = vsinq.f32.pop %v1720
        %vm1724 = vweird.f32 %v182
        %v1725 = vadd.s32 %v1721, 3
        %v1726 = vand.u32 %v1725, 3
        %vm1727 = vcmp.lt.s32.totalorder %v1726, 2
        %vm1728 = vcmp.eq.s32.totalorder %v1726, 0
        %v1729 = vxor.u32 %v1723, 2147483648
        %v1730 = vsel %vm1728, %v1722, %v1729
        %vm1731 = vcmp.eq.s32.totalorder %v1726, 2
        %v1732 = vxor.u32 %v1722, 2147483648
        %v1733 = vsel %vm1731, %v1732, %v1723
        %v1734 = vsel %vm1727, %v1730, %v1733
        %v1735 = vsel %vm1724, nan, %v1734
        %v1736 = vand.u32 2147483647, %v183
        %vm1737 = vcmp.le.f32.partialorder %v1736, 0.7853982
        %vm1738 = vcmp.lt.s32.totalorder %v183, 0
        %v1739 = vand.u32 %v183, 2139095040
        %v1740 = vshrl.u32 %v1739, 23
        %v1741 = vsub.s32 %v1740, 127
        %v1742 = vand.u32 2147483647, %v183
        %v1743 = vand.u32 %v1742, 8388607
        %v1744 = vor.u32 %v1743, 8388608
        %v1745 = vsub.s32 0, %v1744
        %v1746 = vadd.s32 %v1741, 1
        %vm1747 = vcmp.gt.s32.totalorder %v1746, 0
        %v1748 = vsel %vm1747, %v1746, 0
        %v1749 = vshrl.u32 %v1748, 5
        %v1750 = vand.u32 %v1748, 31
        %v1751 = vsub.s32 32, %v1750
        %v1752 = vshrl.u32 683565275, %v1751
        %v1753 = vshll.u32 683565275, %v1750
        %v1754 = vshrl.u32 2475754826, %v1751
        %v1755 = vor.u32 %v1753, %v1754
        %v1756 = vshll.u32 2475754826, %v1750
        %v1757 = vshrl.u32 2131351028, %v1751
        %v1758 = vor.u32 %v1756, %v1757
        %v1759 = vshll.u32 2131351028, %v1750
        %v1760 = vshrl.u32 2102212464, %v1751
        %v1761 = vor.u32 %v1759, %v1760
        %v1762 = vshll.u32 2102212464, %v1750
        %v1763 = vshrl.u32 920167782, %v1751
        %v1764 = vor.u32 %v1762, %v1763
        %v1765 = vshll.u32 920167782, %v1750
        %v1766 = vshrl.u32 1326507024, %v1751
        %v1767 = vor.u32 %v1765, %v1766
        %vm1768 = vcmp.lt.s32.totalorder %v1749, 1
        %vm1769 = vcmp.lt.s32.totalorder %v1749, 2
        %vm1770 = vcmp.lt.s32.totalorder %v1749, 3
        %vm1771 = vcmp.lt.s32.totalorder %v1749, 4
        %v1772 = vsel %vm1768, %v1752, %v1755
        %v1773 = vsel %vm1771, %v1761, 2102212464
        %v1774 = vsel %vm1770, %v1758, %v1773
        %v1775 = vsel %vm1769, %v1772, %v1774
        %v1776 = vsel %vm1768, %v1755, %v1758
        %v1777 = vsel %vm1771, %v1764, 920167782
        %v1778 = vsel %vm1770, %v1761, %v1777
        %v1779 = vsel %vm1769, %v1776, %v1778
        %v1780 = vsel %vm1768, %v1758, %v1761
        %v1781 = vsel %vm1771, %v1767, 1326507024
        %v1782 = vsel %vm1770, %v1764, %v1781
        %v1783 = vsel %vm1769, %v1780, %v1782
        %v1784 = vshll.u32 %v1744, 8
        %v1785 = vmul.u32.u64.compose %v1784, %v1783
        %v1786 = vextract.low.u32 %v1785
        %v1787 = vextract.high.u32 %v1785
        %v1788 = vmul.u32.u64.compose %v1784, %v1779
        %v1789 = vextract.low.u32 %v1788
        %v1790 = vextract.high.u32 %v1788
        %v1791 = vmul.u32 %v1784, %v1775
        %v1792 = vadd.s32 %v1787, %v1789
        %vm1793 = vc.u32 %v1787, %v1789
        %v1794 = vadd.s32 %v1790, 1
        %v1795 = vsel %vm1793, %v1794, %v1790
        %v1796 = vadd.s32 %v1791, %v1795
        %v1797 = vadd.s32 %v1796, 536870912
        %v1798 = vshrl.u32 %v1797, 30
        %v1799 = vshll.u32 %v1798, 30
        %v1800 = vsub.s32 %v1796, %v1799
        %vm1801 = vcmp.lt.s32.totalorder %v1800, 0
        %v1802 = vsub.s32 0, %v1800
        %v1803 = vsel %vm1801, %v1802, %v1800
        %v1804 = vclz %v1803
        %v1805 = vsub.s32 %v1804, 2
        %vm1806 = vcmp.gt.s32.totalorder 0, %v1805
        %v1807 = vsel %vm1806, 0, %v1805
        %v1808 = vsub.s32 32, %v1807
        %v1809 = vshll.u32 %v1800, %v1807
        %v1810 = vshrl.u32 %v1792, %v1808
        %v1811 = vor.u32 %v1809, %v1810
        %v1812 = vsub.s32 4294967266, %v1807
        %v1813 = vadd.s32 %v1812, 127
        %v1814 = vshll.u32 %v1813, 23
        %v1815 = vor.u32 4788187, %v1814
        %v1816 = vand.u32 2147483647, %v1815
        %v1818 = vcvt.s32.f32 %v1811
        %v1819 = vmul.f32 %v1818, %v1816
        %v1820 = vxor.u32 %v1819, 2147483648
        %v1821 = vsel %vm1738, %v1820, %v1819
        %v1822 = vsub.s32 4, %v1798
        %v1823 = vsel %vm1738, %v1822, %v1798
        %v1824 = vsel %vm1737, %v183, %v1821
        %v1825 = vsel %vm1737, 0, %v1823
        %v1826 = vcosq.f32.pop %v1824
        %v1827 = vsinq.f32.pop %v1824
        %vm1828 = vweird.f32 %v183
        %v1829 = vadd.s32 %v1825, 3
        %v1830 = vand.u32 %v1829, 3
        %vm1831 = vcmp.lt.s32.totalorder %v1830, 2
        %vm1832 = vcmp.eq.s32.totalorder %v1830, 0
        %v1833 = vxor.u32 %v1827, 2147483648
        %v1834 = vsel %vm1832, %v1826, %v1833
        %vm1835 = vcmp.eq.s32.totalorder %v1830, 2
        %v1836 = vxor.u32 %v1826, 2147483648
        %v1837 = vsel %vm1835, %v1836, %v1827
        %v1838 = vsel %vm1831, %v1834, %v1837
        %v1839 = vsel %vm1828, nan, %v1838
        %1840 = vst [vmem:[%s135] sm:$0xff] %v286
        %1841 = vst [vmem:[%s135 + $0x8] sm:$0xff] %v389
        %1842 = vst [vmem:[%s135 + $0x10] sm:$0xff] %v492
        %1843 = vst [vmem:[%s135 + $0x18] sm:$0xff] %v595
        %1844 = vst [vmem:[%s135 + $0x20] sm:$0xff] %v698
        %1845 = vst [vmem:[%s135 + $0x28] sm:$0xff] %v801
        %1846 = vst [vmem:[%s135 + $0x30] sm:$0xff] %v904
        %1847 = vst [vmem:[%s135 + $0x38] sm:$0xff] %v1007
        %1848 = vst [vmem:[%s135 + $0x40] sm:$0xff] %v1111
        %1849 = vst [vmem:[%s135 + $0x48] sm:$0xff] %v1215
        %1850 = vst [vmem:[%s135 + $0x50] sm:$0xff] %v1319
        %1851 = vst [vmem:[%s135 + $0x58] sm:$0xff] %v1423
        %1852 = vst [vmem:[%s135 + $0x60] sm:$0xff] %v1527
        %1853 = vst [vmem:[%s135 + $0x68] sm:$0xff] %v1631
        %1854 = vst [vmem:[%s135 + $0x70] sm:$0xff] %v1735
        %1855 = vst [vmem:[%s135 + $0x78] sm:$0xff] %v1839
        %s1856 = sand.u32 %s71, 1
        %s1857 = scalar_lea.sflag [#allocation3], %s1856
        %s1858 = sand.u32 %s71, 1
        %s1859 = smul.addr %s1858, 128
        %s1860 = scalar_lea.vmem [#allocation2], %s1859
        // Predicated region
        $region29: #{tpu_custom_call.1} parent=27 // pred_check
          %p1861 = pneg %p81
        $region30: #{tpu_custom_call.1} parent=27 // pred_check_branch
          %1863 = sbr.rel (%p1861) target = $region32
        $region31: #{tpu_custom_call.1} parent=27 // pred_region
          %s1864 = smul.u32 4, %s16
          %s1866 = ssub.s32 2048, 2048
          %1867 = vsyncadd %s1857, %s1866
          %s1868 = smul.addr %s1864, 128
          %s1869 = scalar_lea.hbm %s2, %s1868
          %s1870 = sshll.u32 %s1860, 4
          %s1871 = int_to_ptr.vmem [resolvable:$true] %s1870
          %1876 = dma.vmem_to_hbm [thread:$0]  %s1871, 2048, %s1869, %s1857, 512, 2048, 32
        $region32: #{tpu_custom_call.1} parent=27 // pred_fallthru
          _
      $region28: #{tpu_custom_call.1} parent=5 // pred_fallthru
        _
      %p1877 = scmp.le.s32.totalorder 2, %s11
      // Predicated region
      $region33: #{tpu_custom_call.1} parent=5 // pred_check
        %p1878 = pneg %p1877
      $region34: #{tpu_custom_call.1} parent=5 // pred_check_branch
        %1880 = sbr.rel (%p1878) target = $region36
      $region35: #{tpu_custom_call.1} parent=5 // pred_region
        %s1881 = ssub.s32 %s11, 2
        // Predicated region
        $region37: #{tpu_custom_call.1} parent=35 // pred_check
          %p1882 = pneg %p87
        $region38: #{tpu_custom_call.1} parent=35 // pred_check_branch
          %1884 = sbr.rel (%p1882) target = $region40
        $region39: #{tpu_custom_call.1} parent=35 // pred_region
          %s1885 = sand.u32 %s72, 1
          %s1886 = scalar_lea.sflag [#allocation3], %s1885
          %s1887 = sand.u32 %s72, 1
          %s1888 = smul.addr %s1887, 128
          %s1889 = scalar_lea.vmem [#allocation2], %s1888
          %1890 = dma.done %s1886, 2048
        $region40: #{tpu_custom_call.1} parent=35 // pred_fallthru
          _
      $region36: #{tpu_custom_call.1} parent=5 // pred_fallthru
        _
    $region6: #{tpu_custom_call.1} parent=1 // loop_footer
      %s15 = sadd.s32 1, %s11
    $region7: #{tpu_custom_call.1} parent=1 // loop_footer_branch
      %10 = sbr.rel target = $region3
    $region8: #{tpu_custom_call.1} parent=1 // loop_exit
      _
    %1891 = vsyncpa [#allocation3], 1
    %s1892 = scalar_lea.sflag [#allocation3], 1
    %1893 = vsyncpa %s1892, 1

</llo_original>
